<compile_context>
chip_gen: v6e
topology: v6e:2x2x1
jax: 0.10.0
libtpu: 0.0.40
codegen_flags: <defaults>
</compile_context>

<pallas_src>
import functools
import math

import jax
import jax.numpy as jnp
from jax import lax
from jax.experimental import pallas as pl
from jax.experimental.pallas import tpu as pltpu


def _mha_kernel(*refs, head_dim, heads_per_block, shared_qkv, mxu_dtype):
    if shared_qkv:
        (act_ref,
         wq_ref, bq_ref, wk_ref, bk_ref, wv_ref, bv_ref, wo_ref, bo_ref,
         x_ref, attn_ref, acc_ref, ctx_ref) = refs
    else:
        (q_ref, k_ref, v_ref,
         wq_ref, bq_ref, wk_ref, bk_ref, wv_ref, bv_ref, wo_ref, bo_ref,
         x_ref, attn_ref, acc_ref, ctx_ref) = refs

    hb = pl.program_id(2)   # head-block axis ("arbitrary", innermost): accumulation axis

    @pl.when(hb == 0)
    def _init():
        acc_ref[...] = jnp.zeros_like(acc_ref)

    tq = x_ref.shape[1]

    if shared_qkv:
        # Self-attention: one activation ref; K/V take the full (L, H) block,
        # the query tile is sliced out of the same block (no triple DMA).
        k = act_ref[0]                                           # (L, H)
        v = k
        q_start = pl.multiple_of(pl.program_id(1) * tq, tq)
        q = act_ref[0, pl.ds(q_start, tq), :]                    # (tq, H)
    else:
        q = q_ref[0]                                             # (tq, H)
        k = k_ref[0]                                             # (L, H)
        v = v_ref[0]                                             # (L, H)

    def cast(a):
        return a.astype(mxu_dtype)

    D = head_dim
    inv_scale = 1.0 / math.sqrt(D)

    # Project all HB heads of this block at once: (., H) @ (H, HB*D), f32 acc.
    q_h = jnp.dot(cast(q), cast(wq_ref[0]), preferred_element_type=jnp.float32) + bq_ref[0]
    k_h = jnp.dot(cast(k), cast(wk_ref[0]), preferred_element_type=jnp.float32) + bk_ref[0]
    v_h = jnp.dot(cast(v), cast(wv_ref[0]), preferred_element_type=jnp.float32) + bv_ref[0]
    # Fold 1/sqrt(D) into the small (tq, HB*D) tile instead of the (tq, L) energy.
    q_h = q_h * inv_scale

    for h in range(heads_per_block):                             # static unroll
        sl = slice(h * D, (h + 1) * D)
        energy = lax.dot_general(
            cast(q_h[:, sl]), cast(k_h[:, sl]),
            dimension_numbers=(((1,), (1,)), ((), ())),
            preferred_element_type=jnp.float32)                  # (tq, L)
        # Numerically stable softmax; divide goes to the EUP via reciprocal.
        energy = energy - jnp.max(energy, axis=-1, keepdims=True)
        p = jnp.exp(energy)
        attn = p * pl.reciprocal(jnp.sum(p, axis=-1, keepdims=True), approx=True)
        attn_ref[0, h] = attn.astype(attn_ref.dtype)
        # TODO(synk): dropout on `attn` is identity (p = 0.0 inference path).
        ctx_ref[:, sl] = jnp.dot(cast(attn), cast(v_h[:, sl]),
                                 preferred_element_type=jnp.float32)

    # fc_o contribution of this head block: one big K = HB*D matmul.
    acc_ref[...] += jnp.dot(cast(ctx_ref[...]), cast(wo_ref[0]),
                            preferred_element_type=jnp.float32)

    @pl.when(hb == pl.num_programs(2) - 1)
    def _finalize():
        x_ref[0] = (acc_ref[...] + bo_ref[...]).astype(x_ref.dtype)


def _pick_heads_per_block(n_heads, head_dim):
    # Target HB * head_dim ~ 256 (MXU-shaped contraction) while dividing n_heads.
    target = max(1, 256 // max(head_dim, 1))
    best = 1
    for cand in range(1, n_heads + 1):
        if n_heads % cand == 0 and cand <= target:
            best = cand
    return best


def _pick_vmem_limit_bytes():
    try:
        kind = jax.devices()[0].device_kind.lower()
    except Exception:
        kind = ""
    if "v5" in kind or "v6" in kind:
        return 96 * 1024 * 1024   # 128 MiB physical VMEM: raise the 16/32 MiB scoped default.
    return 48 * 1024 * 1024       # v7x (64 MiB physical) and unknown chips: leave headroom.


def mha_forward(query, key, value, params, *, n_heads, tq=None,
                heads_per_block=None, mxu_dtype=None, attn_dtype=None,
                vmem_limit_bytes=None):
    """query/key/value: (B, L, H); params in PyTorch nn.Linear layout.

    Returns (x: (B, L, H), attention: (B, n_heads, L, L)).
    """
    B, L, H = query.shape
    assert H % n_heads == 0
    D = H // n_heads
    if heads_per_block is None:
        heads_per_block = _pick_heads_per_block(n_heads, D)
    assert n_heads % heads_per_block == 0
    nHB = n_heads // heads_per_block
    HBD = heads_per_block * D
    if tq is None:
        tq = L if L <= 256 else 256
    assert L % tq == 0
    nQ = L // tq
    if mxu_dtype is None:
        mxu_dtype = query.dtype           # set to jnp.bfloat16 for the fast MXU path
    if attn_dtype is None:
        attn_dtype = query.dtype
    if vmem_limit_bytes is None:
        vmem_limit_bytes = _pick_vmem_limit_bytes()

    shared_qkv = (key is query) and (value is query)

    # --- repack PyTorch-layout weights (out, in) into per-head-block layout ---
    def split_in_proj(w, b):              # w: (H, H), b: (H,)
        wb = jnp.transpose(w.T.reshape(H, nHB, HBD), (1, 0, 2))   # (nHB, H, HBD)
        bb = b.reshape(nHB, 1, HBD)
        return wb, bb

    wq, bq = split_in_proj(params["wq"], params["bq"])
    wk, bk = split_in_proj(params["wk"], params["bk"])
    wv, bv = split_in_proj(params["wv"], params["bv"])
    wo = params["wo"].T.reshape(nHB, HBD, H)                      # (nHB, HBD, H)
    bo = params["bo"].reshape(1, H)

    w_spec = pl.BlockSpec((1, H, HBD), lambda b, qi, hb: (hb, 0, 0))
    b_spec = pl.BlockSpec((1, 1, HBD), lambda b, qi, hb: (hb, 0, 0))
    wo_spec = pl.BlockSpec((1, HBD, H), lambda b, qi, hb: (hb, 0, 0))
    bo_spec = pl.BlockSpec((1, H), lambda b, qi, hb: (0, 0))
    full_act_spec = pl.BlockSpec((1, L, H), lambda b, qi, hb: (b, 0, 0))
    q_act_spec = pl.BlockSpec((1, tq, H), lambda b, qi, hb: (b, qi, 0))

    if shared_qkv:
        act_inputs = (query,)
        act_specs = [full_act_spec]
    else:
        act_inputs = (query, key, value)
        act_specs = [q_act_spec, full_act_spec, full_act_spec]

    kernel = functools.partial(
        _mha_kernel, head_dim=D, heads_per_block=heads_per_block,
        shared_qkv=shared_qkv, mxu_dtype=mxu_dtype)

    x, attn = pl.pallas_call(
        kernel,
        out_shape=(jax.ShapeDtypeStruct((B, L, H), query.dtype),
                   jax.ShapeDtypeStruct((B, n_heads, L, L), attn_dtype)),
        grid_spec=pl.GridSpec(
            grid=(B, nQ, nHB),
            in_specs=act_specs + [
                w_spec, b_spec,                                   # fc_q
                w_spec, b_spec,                                   # fc_k
                w_spec, b_spec,                                   # fc_v
                wo_spec, bo_spec,                                 # fc_o
            ],
            out_specs=[
                pl.BlockSpec((1, tq, H), lambda b, qi, hb: (b, qi, 0)),
                pl.BlockSpec((1, heads_per_block, tq, L),
                             lambda b, qi, hb: (b, hb, qi, 0)),
            ],
            scratch_shapes=[pltpu.VMEM((tq, H), jnp.float32),     # fc_o accumulator
                            pltpu.VMEM((tq, HBD), jnp.float32)],  # per-block contexts
        ),
        compiler_params=pltpu.CompilerParams(
            dimension_semantics=("parallel", "parallel", "arbitrary"),
            vmem_limit_bytes=vmem_limit_bytes),
    )(*act_inputs, wq, bq, wk, bk, wv, bv, wo, bo)
    return x, attn


def reference_forward(query, key, value, params, n_heads):
    """Pure-JAX replica of MultiHeadAttentionLayer.forward (mask=None, p=0)."""
    B, L, H = query.shape
    D = H // n_heads

    def lin(x, w, b):
        return jnp.einsum("blh,oh->blo", x, w) + b

    def split(x):
        return x.reshape(B, L, n_heads, D).transpose(0, 2, 1, 3)

    Q = split(lin(query, params["wq"], params["bq"]))
    K = split(lin(key, params["wk"], params["bk"]))
    V = split(lin(value, params["wv"], params["bv"]))
    energy = jnp.einsum("bhqd,bhkd->bhqk", Q, K) / math.sqrt(D)
    attn = jax.nn.softmax(energy, axis=-1)
    ctx = jnp.einsum("bhqk,bhkd->bhqd", attn, V)
    ctx = ctx.transpose(0, 2, 1, 3).reshape(B, L, H)
    x = jnp.einsum("blh,oh->blo", ctx, params["wo"]) + params["bo"]
    return x, attn


def init_params(key, hid_dim, scale=0.1, dtype=jnp.float32):
    """Parameters in PyTorch nn.Linear layout: weight (out, in), bias (out,)."""
    ks = jax.random.split(key, 8)

    def w(k):
        return jax.random.normal(k, (hid_dim, hid_dim), dtype) * scale

    def b(k):
        return jax.random.normal(k, (hid_dim,), dtype) * scale

    return {"wq": w(ks[0]), "bq": b(ks[1]),
            "wk": w(ks[2]), "bk": b(ks[3]),
            "wv": w(ks[4]), "bv": b(ks[5]),
            "wo": w(ks[6]), "bo": b(ks[7])}


if __name__ == "__main__":
    # ---- small shapes: batch=2, seq=8, hid_dim=32, n_heads=4 (head_dim=8) ----
    B, L, HID, NH = 2, 8, 32, 4
    root = jax.random.PRNGKey(0)
    kq, kk, kv, kp = jax.random.split(root, 4)
    q_in = jax.random.normal(kq, (B, L, HID), jnp.float32)
    k_in = jax.random.normal(kk, (B, L, HID), jnp.float32)
    v_in = jax.random.normal(kv, (B, L, HID), jnp.float32)
    params = init_params(kp, HID)

    # Cross-attention path (distinct q/k/v inputs).
    x, attn = jax.block_until_ready(mha_forward(q_in, k_in, v_in, params, n_heads=NH))
    x_ref, attn_ref = reference_forward(q_in, k_in, v_in, params, NH)
    assert x.shape == (B, L, HID), x.shape
    assert attn.shape == (B, NH, L, L), attn.shape
    # Tolerance relaxed vs. f32-exact because softmax uses the EUP approximate reciprocal.
    assert jnp.allclose(x, x_ref, atol=2e-3, rtol=2e-3), "x mismatch vs reference"
    assert jnp.allclose(attn, attn_ref, atol=2e-3, rtol=2e-3), "attn mismatch vs reference"

    # Self-attention path (single activation input, deduped DMA).
    xs, attns = jax.block_until_ready(mha_forward(q_in, q_in, q_in, params, n_heads=NH))
    xs_ref, attns_ref = reference_forward(q_in, q_in, q_in, params, NH)
    assert jnp.allclose(xs, xs_ref, atol=2e-3, rtol=2e-3), "self-attn x mismatch"
    assert jnp.allclose(attns, attns_ref, atol=2e-3, rtol=2e-3), "self-attn attn mismatch"

    # Production-shaped check: exercises q-tiling + multi-head-block accumulation
    # and the (8,128) BlockSpec divisibility at real tile sizes.
    B2, L2, H2, NH2 = 2, 256, 256, 8
    kq2, kk2, kv2, kp2 = jax.random.split(jax.random.PRNGKey(1), 4)
    q2 = jax.random.normal(kq2, (B2, L2, H2), jnp.float32)
    k2 = jax.random.normal(kk2, (B2, L2, H2), jnp.float32)
    v2 = jax.random.normal(kv2, (B2, L2, H2), jnp.float32)
    params2 = init_params(kp2, H2, scale=0.05)
    x2, attn2 = jax.block_until_ready(
        mha_forward(q2, k2, v2, params2, n_heads=NH2, tq=128, heads_per_block=4))
    x2_ref, attn2_ref = reference_forward(q2, k2, v2, params2, NH2)
    assert jnp.allclose(x2, x2_ref, atol=2e-3, rtol=2e-3), "large x mismatch"
    assert jnp.allclose(attn2, attn2_ref, atol=2e-3, rtol=2e-3), "large attn mismatch"

    print("KERNEL_OK")
</pallas_src>

<mosaic_0001>
module attributes {stable_mosaic.version = 11 : i64} {
  func.func @_mha_kernel(%arg0: i32, %arg1: i32, %arg2: i32, %arg3: memref<1x8x32xf32, #tpu.memory_space<vmem>>, %arg4: memref<1x8x32xf32, #tpu.memory_space<vmem>>, %arg5: memref<1x8x32xf32, #tpu.memory_space<vmem>>, %arg6: memref<1x32x32xf32, #tpu.memory_space<vmem>>, %arg7: memref<1x1x32xf32, #tpu.memory_space<vmem>>, %arg8: memref<1x32x32xf32, #tpu.memory_space<vmem>>, %arg9: memref<1x1x32xf32, #tpu.memory_space<vmem>>, %arg10: memref<1x32x32xf32, #tpu.memory_space<vmem>>, %arg11: memref<1x1x32xf32, #tpu.memory_space<vmem>>, %arg12: memref<1x32x32xf32, #tpu.memory_space<vmem>>, %arg13: memref<1x32xf32, #tpu.memory_space<vmem>>, %arg14: memref<1x8x32xf32, #tpu.memory_space<vmem>>, %arg15: memref<1x4x8x8xf32, #tpu.memory_space<vmem>>, %arg16: memref<8x32xf32, #tpu.memory_space<vmem>>, %arg17: memref<8x32xf32, #tpu.memory_space<vmem>>) attributes {dimension_semantics = [#tpu.dimension_semantics<parallel>, #tpu.dimension_semantics<parallel>, #tpu.dimension_semantics<arbitrary>], iteration_bounds = array<i64: 2, 1, 1>, scalar_prefetch = 0 : i64, scratch_operands = 2 : i64, tpu.core_type = #tpu.core_type<tc>, window_params = [{transform_indices = @transform_0, window_bounds = array<i64: 1, 8, 32>}, {transform_indices = @transform_1, window_bounds = array<i64: 1, 8, 32>}, {transform_indices = @transform_2, window_bounds = array<i64: 1, 8, 32>}, {transform_indices = @transform_3, window_bounds = array<i64: 1, 32, 32>}, {transform_indices = @transform_4, window_bounds = array<i64: 1, 1, 32>}, {transform_indices = @transform_5, window_bounds = array<i64: 1, 32, 32>}, {transform_indices = @transform_6, window_bounds = array<i64: 1, 1, 32>}, {transform_indices = @transform_7, window_bounds = array<i64: 1, 32, 32>}, {transform_indices = @transform_8, window_bounds = array<i64: 1, 1, 32>}, {transform_indices = @transform_9, window_bounds = array<i64: 1, 32, 32>}, {pipeline_mode = #tpu.pipeline_mode<synchronous>, transform_indices = @transform_10, window_bounds = array<i64: 1, 32>}, {transform_indices = @transform_11, window_bounds = array<i64: 1, 8, 32>}, {transform_indices = @transform_12, window_bounds = array<i64: 1, 4, 8, 8>}]} {
    %c0_i32 = arith.constant 0 : i32
    %0 = arith.cmpi eq, %arg2, %c0_i32 : i32
    %1 = arith.extui %0 : i1 to i32
    %c0_i32_0 = arith.constant 0 : i32
    %2 = arith.cmpi ne, %1, %c0_i32_0 : i32
    scf.if %2 {
      %cst_76 = arith.constant 0.000000e+00 : f32
      %118 = vector.broadcast %cst_76 : f32 to vector<8x32xf32>
      %c0_77 = arith.constant 0 : index
      %c0_78 = arith.constant 0 : index
      %119 = vector.load %arg16[%c0_77, %c0_78] : memref<8x32xf32, #tpu.memory_space<vmem>>, vector<8x32xf32>
      tpu.vector_store %arg16[%c0_77, %c0_78], %118 {strides = array<i32>} : memref<8x32xf32, #tpu.memory_space<vmem>>, vector<8x32xf32>,
    } else {
    }
    %c0 = arith.constant 0 : index
    %c0_1 = arith.constant 0 : index
    %c0_2 = arith.constant 0 : index
    %3 = vector.load %arg3[%c0, %c0_1, %c0_2] : memref<1x8x32xf32, #tpu.memory_space<vmem>>, vector<1x8x32xf32>
    %4 = vector.shape_cast %3 : vector<1x8x32xf32> to vector<8x32xf32>
    %c0_3 = arith.constant 0 : index
    %c0_4 = arith.constant 0 : index
    %c0_5 = arith.constant 0 : index
    %5 = vector.load %arg4[%c0_3, %c0_4, %c0_5] : memref<1x8x32xf32, #tpu.memory_space<vmem>>, vector<1x8x32xf32>
    %6 = vector.shape_cast %5 : vector<1x8x32xf32> to vector<8x32xf32>
    %c0_6 = arith.constant 0 : index
    %c0_7 = arith.constant 0 : index
    %c0_8 = arith.constant 0 : index
    %7 = vector.load %arg5[%c0_6, %c0_7, %c0_8] : memref<1x8x32xf32, #tpu.memory_space<vmem>>, vector<1x8x32xf32>
    %8 = vector.shape_cast %7 : vector<1x8x32xf32> to vector<8x32xf32>
    %c0_9 = arith.constant 0 : index
    %c0_10 = arith.constant 0 : index
    %c0_11 = arith.constant 0 : index
    %9 = vector.load %arg6[%c0_9, %c0_10, %c0_11] : memref<1x32x32xf32, #tpu.memory_space<vmem>>, vector<1x32x32xf32>
    %10 = vector.shape_cast %9 : vector<1x32x32xf32> to vector<32x32xf32>
    %cst = arith.constant dense<0.000000e+00> : vector<8x32xf32>
    %11 = tpu.matmul %4, %10, %cst {dimension_numbers = #tpu.dot_dimension_numbers<[1], [0], [0], [1], [0, 0, 1, 1], [], []>} : vector<8x32xf32>, vector<32x32xf32>, vector<8x32xf32> -> vector<8x32xf32>
    %c0_12 = arith.constant 0 : index
    %c0_13 = arith.constant 0 : index
    %c0_14 = arith.constant 0 : index
    %12 = vector.load %arg7[%c0_12, %c0_13, %c0_14] : memref<1x1x32xf32, #tpu.memory_space<vmem>>, vector<1x1x32xf32>
    %13 = vector.shape_cast %12 : vector<1x1x32xf32> to vector<1x32xf32>
    %14 = vector.broadcast %13 : vector<1x32xf32> to vector<8x32xf32>
    %15 = arith.addf %11, %14 : vector<8x32xf32>
    %c0_15 = arith.constant 0 : index
    %c0_16 = arith.constant 0 : index
    %c0_17 = arith.constant 0 : index
    %16 = vector.load %arg8[%c0_15, %c0_16, %c0_17] : memref<1x32x32xf32, #tpu.memory_space<vmem>>, vector<1x32x32xf32>
    %17 = vector.shape_cast %16 : vector<1x32x32xf32> to vector<32x32xf32>
    %cst_18 = arith.constant dense<0.000000e+00> : vector<8x32xf32>
    %18 = tpu.matmul %6, %17, %cst_18 {dimension_numbers = #tpu.dot_dimension_numbers<[1], [0], [0], [1], [0, 0, 1, 1], [], []>} : vector<8x32xf32>, vector<32x32xf32>, vector<8x32xf32> -> vector<8x32xf32>
    %c0_19 = arith.constant 0 : index
    %c0_20 = arith.constant 0 : index
    %c0_21 = arith.constant 0 : index
    %19 = vector.load %arg9[%c0_19, %c0_20, %c0_21] : memref<1x1x32xf32, #tpu.memory_space<vmem>>, vector<1x1x32xf32>
    %20 = vector.shape_cast %19 : vector<1x1x32xf32> to vector<1x32xf32>
    %21 = vector.broadcast %20 : vector<1x32xf32> to vector<8x32xf32>
    %22 = arith.addf %18, %21 : vector<8x32xf32>
    %c0_22 = arith.constant 0 : index
    %c0_23 = arith.constant 0 : index
    %c0_24 = arith.constant 0 : index
    %23 = vector.load %arg10[%c0_22, %c0_23, %c0_24] : memref<1x32x32xf32, #tpu.memory_space<vmem>>, vector<1x32x32xf32>
    %24 = vector.shape_cast %23 : vector<1x32x32xf32> to vector<32x32xf32>
    %cst_25 = arith.constant dense<0.000000e+00> : vector<8x32xf32>
    %25 = tpu.matmul %8, %24, %cst_25 {dimension_numbers = #tpu.dot_dimension_numbers<[1], [0], [0], [1], [0, 0, 1, 1], [], []>} : vector<8x32xf32>, vector<32x32xf32>, vector<8x32xf32> -> vector<8x32xf32>
    %c0_26 = arith.constant 0 : index
    %c0_27 = arith.constant 0 : index
    %c0_28 = arith.constant 0 : index
    %26 = vector.load %arg11[%c0_26, %c0_27, %c0_28] : memref<1x1x32xf32, #tpu.memory_space<vmem>>, vector<1x1x32xf32>
    %27 = vector.shape_cast %26 : vector<1x1x32xf32> to vector<1x32xf32>
    %28 = vector.broadcast %27 : vector<1x32xf32> to vector<8x32xf32>
    %29 = arith.addf %25, %28 : vector<8x32xf32>
    %cst_29 = arith.constant 0.353553385 : f32
    %30 = vector.broadcast %cst_29 : f32 to vector<8x32xf32>
    %31 = arith.mulf %15, %30 : vector<8x32xf32>
    %32 = vector.extract_strided_slice %31 {offsets = [0, 0], sizes = [8, 8], strides = [1, 1]} : vector<8x32xf32> to vector<8x8xf32>
    %33 = vector.extract_strided_slice %22 {offsets = [0, 0], sizes = [8, 8], strides = [1, 1]} : vector<8x32xf32> to vector<8x8xf32>
    %cst_30 = arith.constant dense<0.000000e+00> : vector<8x8xf32>
    %34 = tpu.matmul %32, %33, %cst_30 {dimension_numbers = #tpu.dot_dimension_numbers<[1], [1], [0], [0], [0, 0, 1, 0], [], []>} : vector<8x8xf32>, vector<8x8xf32>, vector<8x8xf32> -> vector<8x8xf32>
    %cst_31 = arith.constant dense<0xFF800000> : vector<8xf32>
    %35 = vector.multi_reduction <maximumf>, %34, %cst_31 [1] : vector<8x8xf32> to vector<8xf32>
    %36 = vector.shape_cast %35 : vector<8xf32> to vector<8x1xf32>
    %37 = vector.broadcast %36 : vector<8x1xf32> to vector<8x8xf32>
    %38 = arith.subf %34, %37 : vector<8x8xf32>
    %39 = math.exp %38 : vector<8x8xf32>
    %cst_32 = arith.constant dense<0.000000e+00> : vector<8xf32>
    %40 = vector.multi_reduction <add>, %39, %cst_32 [1] : vector<8x8xf32> to vector<8xf32>
    %41 = vector.shape_cast %40 : vector<8xf32> to vector<8x1xf32>
    %42 = tpu.reciprocal %41 {approx = true} : vector<8x1xf32> -> vector<8x1xf32>
    %43 = vector.broadcast %42 : vector<8x1xf32> to vector<8x8xf32>
    %44 = arith.mulf %39, %43 : vector<8x8xf32>
    %c0_33 = arith.constant 0 : index
    %c0_34 = arith.constant 0 : index
    %c0_35 = arith.constant 0 : index
    %c0_36 = arith.constant 0 : index
    %45 = vector.load %arg15[%c0_33, %c0_34, %c0_35, %c0_36] : memref<1x4x8x8xf32, #tpu.memory_space<vmem>>, vector<1x1x8x8xf32>
    %46 = vector.shape_cast %45 : vector<1x1x8x8xf32> to vector<8x8xf32>
    %47 = vector.shape_cast %44 : vector<8x8xf32> to vector<1x1x8x8xf32>
    tpu.vector_store %arg15[%c0_33, %c0_34, %c0_35, %c0_36], %47 {strides = array<i32>} : memref<1x4x8x8xf32, #tpu.memory_space<vmem>>, vector<1x1x8x8xf32>,
    %48 = vector.extract_strided_slice %29 {offsets = [0, 0], sizes = [8, 8], strides = [1, 1]} : vector<8x32xf32> to vector<8x8xf32>
    %cst_37 = arith.constant dense<0.000000e+00> : vector<8x8xf32>
    %49 = tpu.matmul %44, %48, %cst_37 {dimension_numbers = #tpu.dot_dimension_numbers<[1], [0], [0], [1], [0, 0, 1, 1], [], []>} : vector<8x8xf32>, vector<8x8xf32>, vector<8x8xf32> -> vector<8x8xf32>
    %c0_38 = arith.constant 0 : index
    %c0_39 = arith.constant 0 : index
    %50 = vector.load %arg17[%c0_38, %c0_39] : memref<8x32xf32, #tpu.memory_space<vmem>>, vector<8x8xf32>
    tpu.vector_store %arg17[%c0_38, %c0_39], %49 {strides = array<i32>} : memref<8x32xf32, #tpu.memory_space<vmem>>, vector<8x8xf32>,
    %51 = vector.extract_strided_slice %31 {offsets = [0, 8], sizes = [8, 8], strides = [1, 1]} : vector<8x32xf32> to vector<8x8xf32>
    %52 = vector.extract_strided_slice %22 {offsets = [0, 8], sizes = [8, 8], strides = [1, 1]} : vector<8x32xf32> to vector<8x8xf32>
    %cst_40 = arith.constant dense<0.000000e+00> : vector<8x8xf32>
    %53 = tpu.matmul %51, %52, %cst_40 {dimension_numbers = #tpu.dot_dimension_numbers<[1], [1], [0], [0], [0, 0, 1, 0], [], []>} : vector<8x8xf32>, vector<8x8xf32>, vector<8x8xf32> -> vector<8x8xf32>
    %cst_41 = arith.constant dense<0xFF800000> : vector<8xf32>
    %54 = vector.multi_reduction <maximumf>, %53, %cst_41 [1] : vector<8x8xf32> to vector<8xf32>
    %55 = vector.shape_cast %54 : vector<8xf32> to vector<8x1xf32>
    %56 = vector.broadcast %55 : vector<8x1xf32> to vector<8x8xf32>
    %57 = arith.subf %53, %56 : vector<8x8xf32>
    %58 = math.exp %57 : vector<8x8xf32>
    %cst_42 = arith.constant dense<0.000000e+00> : vector<8xf32>
    %59 = vector.multi_reduction <add>, %58, %cst_42 [1] : vector<8x8xf32> to vector<8xf32>
    %60 = vector.shape_cast %59 : vector<8xf32> to vector<8x1xf32>
    %61 = tpu.reciprocal %60 {approx = true} : vector<8x1xf32> -> vector<8x1xf32>
    %62 = vector.broadcast %61 : vector<8x1xf32> to vector<8x8xf32>
    %63 = arith.mulf %58, %62 : vector<8x8xf32>
    %c0_43 = arith.constant 0 : index
    %c1 = arith.constant 1 : index
    %c0_44 = arith.constant 0 : index
    %c0_45 = arith.constant 0 : index
    %64 = vector.load %arg15[%c0_43, %c1, %c0_44, %c0_45] : memref<1x4x8x8xf32, #tpu.memory_space<vmem>>, vector<1x1x8x8xf32>
    %65 = vector.shape_cast %64 : vector<1x1x8x8xf32> to vector<8x8xf32>
    %66 = vector.shape_cast %63 : vector<8x8xf32> to vector<1x1x8x8xf32>
    tpu.vector_store %arg15[%c0_43, %c1, %c0_44, %c0_45], %66 {strides = array<i32>} : memref<1x4x8x8xf32, #tpu.memory_space<vmem>>, vector<1x1x8x8xf32>,
    %67 = vector.extract_strided_slice %29 {offsets = [0, 8], sizes = [8, 8], strides = [1, 1]} : vector<8x32xf32> to vector<8x8xf32>
    %cst_46 = arith.constant dense<0.000000e+00> : vector<8x8xf32>
    %68 = tpu.matmul %63, %67, %cst_46 {dimension_numbers = #tpu.dot_dimension_numbers<[1], [0], [0], [1], [0, 0, 1, 1], [], []>} : vector<8x8xf32>, vector<8x8xf32>, vector<8x8xf32> -> vector<8x8xf32>
    %c0_47 = arith.constant 0 : index
    %c8 = arith.constant 8 : index
    %69 = vector.load %arg17[%c0_47, %c8] : memref<8x32xf32, #tpu.memory_space<vmem>>, vector<8x8xf32>
    tpu.vector_store %arg17[%c0_47, %c8], %68 {strides = array<i32>} : memref<8x32xf32, #tpu.memory_space<vmem>>, vector<8x8xf32>,
    %70 = vector.extract_strided_slice %31 {offsets = [0, 16], sizes = [8, 8], strides = [1, 1]} : vector<8x32xf32> to vector<8x8xf32>
    %71 = vector.extract_strided_slice %22 {offsets = [0, 16], sizes = [8, 8], strides = [1, 1]} : vector<8x32xf32> to vector<8x8xf32>
    %cst_48 = arith.constant dense<0.000000e+00> : vector<8x8xf32>
    %72 = tpu.matmul %70, %71, %cst_48 {dimension_numbers = #tpu.dot_dimension_numbers<[1], [1], [0], [0], [0, 0, 1, 0], [], []>} : vector<8x8xf32>, vector<8x8xf32>, vector<8x8xf32> -> vector<8x8xf32>
    %cst_49 = arith.constant dense<0xFF800000> : vector<8xf32>
    %73 = vector.multi_reduction <maximumf>, %72, %cst_49 [1] : vector<8x8xf32> to vector<8xf32>
    %74 = vector.shape_cast %73 : vector<8xf32> to vector<8x1xf32>
    %75 = vector.broadcast %74 : vector<8x1xf32> to vector<8x8xf32>
    %76 = arith.subf %72, %75 : vector<8x8xf32>
    %77 = math.exp %76 : vector<8x8xf32>
    %cst_50 = arith.constant dense<0.000000e+00> : vector<8xf32>
    %78 = vector.multi_reduction <add>, %77, %cst_50 [1] : vector<8x8xf32> to vector<8xf32>
    %79 = vector.shape_cast %78 : vector<8xf32> to vector<8x1xf32>
    %80 = tpu.reciprocal %79 {approx = true} : vector<8x1xf32> -> vector<8x1xf32>
    %81 = vector.broadcast %80 : vector<8x1xf32> to vector<8x8xf32>
    %82 = arith.mulf %77, %81 : vector<8x8xf32>
    %c0_51 = arith.constant 0 : index
    %c2 = arith.constant 2 : index
    %c0_52 = arith.constant 0 : index
    %c0_53 = arith.constant 0 : index
    %83 = vector.load %arg15[%c0_51, %c2, %c0_52, %c0_53] : memref<1x4x8x8xf32, #tpu.memory_space<vmem>>, vector<1x1x8x8xf32>
    %84 = vector.shape_cast %83 : vector<1x1x8x8xf32> to vector<8x8xf32>
    %85 = vector.shape_cast %82 : vector<8x8xf32> to vector<1x1x8x8xf32>
    tpu.vector_store %arg15[%c0_51, %c2, %c0_52, %c0_53], %85 {strides = array<i32>} : memref<1x4x8x8xf32, #tpu.memory_space<vmem>>, vector<1x1x8x8xf32>,
    %86 = vector.extract_strided_slice %29 {offsets = [0, 16], sizes = [8, 8], strides = [1, 1]} : vector<8x32xf32> to vector<8x8xf32>
    %cst_54 = arith.constant dense<0.000000e+00> : vector<8x8xf32>
    %87 = tpu.matmul %82, %86, %cst_54 {dimension_numbers = #tpu.dot_dimension_numbers<[1], [0], [0], [1], [0, 0, 1, 1], [], []>} : vector<8x8xf32>, vector<8x8xf32>, vector<8x8xf32> -> vector<8x8xf32>
    %c0_55 = arith.constant 0 : index
    %c16 = arith.constant 16 : index
    %88 = vector.load %arg17[%c0_55, %c16] : memref<8x32xf32, #tpu.memory_space<vmem>>, vector<8x8xf32>
    tpu.vector_store %arg17[%c0_55, %c16], %87 {strides = array<i32>} : memref<8x32xf32, #tpu.memory_space<vmem>>, vector<8x8xf32>,
    %89 = vector.extract_strided_slice %31 {offsets = [0, 24], sizes = [8, 8], strides = [1, 1]} : vector<8x32xf32> to vector<8x8xf32>
    %90 = vector.extract_strided_slice %22 {offsets = [0, 24], sizes = [8, 8], strides = [1, 1]} : vector<8x32xf32> to vector<8x8xf32>
    %cst_56 = arith.constant dense<0.000000e+00> : vector<8x8xf32>
    %91 = tpu.matmul %89, %90, %cst_56 {dimension_numbers = #tpu.dot_dimension_numbers<[1], [1], [0], [0], [0, 0, 1, 0], [], []>} : vector<8x8xf32>, vector<8x8xf32>, vector<8x8xf32> -> vector<8x8xf32>
    %cst_57 = arith.constant dense<0xFF800000> : vector<8xf32>
    %92 = vector.multi_reduction <maximumf>, %91, %cst_57 [1] : vector<8x8xf32> to vector<8xf32>
    %93 = vector.shape_cast %92 : vector<8xf32> to vector<8x1xf32>
    %94 = vector.broadcast %93 : vector<8x1xf32> to vector<8x8xf32>
    %95 = arith.subf %91, %94 : vector<8x8xf32>
    %96 = math.exp %95 : vector<8x8xf32>
    %cst_58 = arith.constant dense<0.000000e+00> : vector<8xf32>
    %97 = vector.multi_reduction <add>, %96, %cst_58 [1] : vector<8x8xf32> to vector<8xf32>
    %98 = vector.shape_cast %97 : vector<8xf32> to vector<8x1xf32>
    %99 = tpu.reciprocal %98 {approx = true} : vector<8x1xf32> -> vector<8x1xf32>
    %100 = vector.broadcast %99 : vector<8x1xf32> to vector<8x8xf32>
    %101 = arith.mulf %96, %100 : vector<8x8xf32>
    %c0_59 = arith.constant 0 : index
    %c3 = arith.constant 3 : index
    %c0_60 = arith.constant 0 : index
    %c0_61 = arith.constant 0 : index
    %102 = vector.load %arg15[%c0_59, %c3, %c0_60, %c0_61] : memref<1x4x8x8xf32, #tpu.memory_space<vmem>>, vector<1x1x8x8xf32>
    %103 = vector.shape_cast %102 : vector<1x1x8x8xf32> to vector<8x8xf32>
    %104 = vector.shape_cast %101 : vector<8x8xf32> to vector<1x1x8x8xf32>
    tpu.vector_store %arg15[%c0_59, %c3, %c0_60, %c0_61], %104 {strides = array<i32>} : memref<1x4x8x8xf32, #tpu.memory_space<vmem>>, vector<1x1x8x8xf32>,
    %105 = vector.extract_strided_slice %29 {offsets = [0, 24], sizes = [8, 8], strides = [1, 1]} : vector<8x32xf32> to vector<8x8xf32>
    %cst_62 = arith.constant dense<0.000000e+00> : vector<8x8xf32>
    %106 = tpu.matmul %101, %105, %cst_62 {dimension_numbers = #tpu.dot_dimension_numbers<[1], [0], [0], [1], [0, 0, 1, 1], [], []>} : vector<8x8xf32>, vector<8x8xf32>, vector<8x8xf32> -> vector<8x8xf32>
    %c0_63 = arith.constant 0 : index
    %c24 = arith.constant 24 : index
    %107 = vector.load %arg17[%c0_63, %c24] : memref<8x32xf32, #tpu.memory_space<vmem>>, vector<8x8xf32>
    tpu.vector_store %arg17[%c0_63, %c24], %106 {strides = array<i32>} : memref<8x32xf32, #tpu.memory_space<vmem>>, vector<8x8xf32>,
    %c0_64 = arith.constant 0 : index
    %c0_65 = arith.constant 0 : index
    %108 = vector.load %arg16[%c0_64, %c0_65] : memref<8x32xf32, #tpu.memory_space<vmem>>, vector<8x32xf32>
    %c0_66 = arith.constant 0 : index
    %c0_67 = arith.constant 0 : index
    %109 = vector.load %arg17[%c0_66, %c0_67] : memref<8x32xf32, #tpu.memory_space<vmem>>, vector<8x32xf32>
    %c0_68 = arith.constant 0 : index
    %c0_69 = arith.constant 0 : index
    %c0_70 = arith.constant 0 : index
    %110 = vector.load %arg12[%c0_68, %c0_69, %c0_70] : memref<1x32x32xf32, #tpu.memory_space<vmem>>, vector<1x32x32xf32>
    %111 = vector.shape_cast %110 : vector<1x32x32xf32> to vector<32x32xf32>
    %cst_71 = arith.constant dense<0.000000e+00> : vector<8x32xf32>
    %112 = tpu.matmul %109, %111, %cst_71 {dimension_numbers = #tpu.dot_dimension_numbers<[1], [0], [0], [1], [0, 0, 1, 1], [], []>} : vector<8x32xf32>, vector<32x32xf32>, vector<8x32xf32> -> vector<8x32xf32>
    %113 = arith.addf %108, %112 : vector<8x32xf32>
    %c0_72 = arith.constant 0 : index
    %c0_73 = arith.constant 0 : index
    %114 = vector.load %arg16[%c0_72, %c0_73] : memref<8x32xf32, #tpu.memory_space<vmem>>, vector<8x32xf32>
    tpu.vector_store %arg16[%c0_72, %c0_73], %113 {strides = array<i32>} : memref<8x32xf32, #tpu.memory_space<vmem>>, vector<8x32xf32>,
    %c0_i32_74 = arith.constant 0 : i32
    %115 = arith.cmpi eq, %arg2, %c0_i32_74 : i32
    %116 = arith.extui %115 : i1 to i32
    %c0_i32_75 = arith.constant 0 : i32
    %117 = arith.cmpi ne, %116, %c0_i32_75 : i32
    scf.if %117 {
      %c0_76 = arith.constant 0 : index
      %c0_77 = arith.constant 0 : index
      %118 = vector.load %arg16[%c0_76, %c0_77] : memref<8x32xf32, #tpu.memory_space<vmem>>, vector<8x32xf32>
      %c0_78 = arith.constant 0 : index
      %c0_79 = arith.constant 0 : index
      %119 = vector.load %arg13[%c0_78, %c0_79] : memref<1x32xf32, #tpu.memory_space<vmem>>, vector<1x32xf32>
      %120 = vector.broadcast %119 : vector<1x32xf32> to vector<8x32xf32>
      %121 = arith.addf %118, %120 : vector<8x32xf32>
      %c0_80 = arith.constant 0 : index
      %c0_81 = arith.constant 0 : index
      %c0_82 = arith.constant 0 : index
      %122 = vector.load %arg14[%c0_80, %c0_81, %c0_82] : memref<1x8x32xf32, #tpu.memory_space<vmem>>, vector<1x8x32xf32>
      %123 = vector.shape_cast %122 : vector<1x8x32xf32> to vector<8x32xf32>
      %124 = vector.shape_cast %121 : vector<8x32xf32> to vector<1x8x32xf32>
      tpu.vector_store %arg14[%c0_80, %c0_81, %c0_82], %124 {strides = array<i32>} : memref<1x8x32xf32, #tpu.memory_space<vmem>>, vector<1x8x32xf32>,
    } else {
    }
    return
  }
  func.func @transform_0(%arg0: i32, %arg1: i32, %arg2: i32) -> (i32, i32, i32) {
    %c0_i32 = arith.constant 0 : i32
    %c0_i32_0 = arith.constant 0 : i32
    return %arg0, %arg1, %c0_i32 : i32, i32, i32
  }
  func.func @transform_1(%arg0: i32, %arg1: i32, %arg2: i32) -> (i32, i32, i32) {
    %c0_i32 = arith.constant 0 : i32
    %c0_i32_0 = arith.constant 0 : i32
    %c0_i32_1 = arith.constant 0 : i32
    return %arg0, %c0_i32, %c0_i32_0 : i32, i32, i32
  }
  func.func @transform_2(%arg0: i32, %arg1: i32, %arg2: i32) -> (i32, i32, i32) {
    %c0_i32 = arith.constant 0 : i32
    %c0_i32_0 = arith.constant 0 : i32
    %c0_i32_1 = arith.constant 0 : i32
    return %arg0, %c0_i32, %c0_i32_0 : i32, i32, i32
  }
  func.func @transform_3(%arg0: i32, %arg1: i32, %arg2: i32) -> (i32, i32, i32) {
    %c0_i32 = arith.constant 0 : i32
    %c0_i32_0 = arith.constant 0 : i32
    %c0_i32_1 = arith.constant 0 : i32
    return %arg2, %c0_i32, %c0_i32_0 : i32, i32, i32
  }
  func.func @transform_4(%arg0: i32, %arg1: i32, %arg2: i32) -> (i32, i32, i32) {
    %c0_i32 = arith.constant 0 : i32
    %c0_i32_0 = arith.constant 0 : i32
    %c0_i32_1 = arith.constant 0 : i32
    return %arg2, %c0_i32, %c0_i32_0 : i32, i32, i32
  }
  func.func @transform_5(%arg0: i32, %arg1: i32, %arg2: i32) -> (i32, i32, i32) {
    %c0_i32 = arith.constant 0 : i32
    %c0_i32_0 = arith.constant 0 : i32
    %c0_i32_1 = arith.constant 0 : i32
    return %arg2, %c0_i32, %c0_i32_0 : i32, i32, i32
  }
  func.func @transform_6(%arg0: i32, %arg1: i32, %arg2: i32) -> (i32, i32, i32) {
    %c0_i32 = arith.constant 0 : i32
    %c0_i32_0 = arith.constant 0 : i32
    %c0_i32_1 = arith.constant 0 : i32
    return %arg2, %c0_i32, %c0_i32_0 : i32, i32, i32
  }
  func.func @transform_7(%arg0: i32, %arg1: i32, %arg2: i32) -> (i32, i32, i32) {
    %c0_i32 = arith.constant 0 : i32
    %c0_i32_0 = arith.constant 0 : i32
    %c0_i32_1 = arith.constant 0 : i32
    return %arg2, %c0_i32, %c0_i32_0 : i32, i32, i32
  }
  func.func @transform_8(%arg0: i32, %arg1: i32, %arg2: i32) -> (i32, i32, i32) {
    %c0_i32 = arith.constant 0 : i32
    %c0_i32_0 = arith.constant 0 : i32
    %c0_i32_1 = arith.constant 0 : i32
    return %arg2, %c0_i32, %c0_i32_0 : i32, i32, i32
  }
  func.func @transform_9(%arg0: i32, %arg1: i32, %arg2: i32) -> (i32, i32, i32) {
    %c0_i32 = arith.constant 0 : i32
    %c0_i32_0 = arith.constant 0 : i32
    %c0_i32_1 = arith.constant 0 : i32
    return %arg2, %c0_i32, %c0_i32_0 : i32, i32, i32
  }
  func.func @transform_10(%arg0: i32, %arg1: i32, %arg2: i32) -> (i32, i32) {
    %c0_i32 = arith.constant 0 : i32
    %c0_i32_0 = arith.constant 0 : i32
    %c0_i32_1 = arith.constant 0 : i32
    return %c0_i32, %c0_i32_0 : i32, i32
  }
  func.func @transform_11(%arg0: i32, %arg1: i32, %arg2: i32) -> (i32, i32, i32) {
    %c0_i32 = arith.constant 0 : i32
    %c0_i32_0 = arith.constant 0 : i32
    return %arg0, %arg1, %c0_i32 : i32, i32, i32
  }
  func.func @transform_12(%arg0: i32, %arg1: i32, %arg2: i32) -> (i32, i32, i32, i32) {
    %c0_i32 = arith.constant 0 : i32
    %c0_i32_0 = arith.constant 0 : i32
    return %arg0, %arg2, %arg1, %c0_i32 : i32, i32, i32, i32
  }
}

</mosaic_0001>

<llo_original>
// kernel: tpu_custom_call.1
$region0: #{tpu_custom_call.1}
  #allocation0 [shape = 'u32[]', space=smem, size = 0x4, offset = 0x4, fixed_abs, tag = 'smem constant byte address 0x4 - core index']
  #allocation1 [shape = 'u32[144,128]{1,0:T(1,128)}', space=vmem, size = 0x12000, scoped, tag = 'internal scratch']
  #allocation2 [shape = 'f32[8,32]{1,0:T(8,128)}', space=vmem, size = 0x1000, scoped, tag = 'scratch operand']
  #allocation3 [shape = 'f32[8,32]{1,0:T(8,128)}', space=vmem, size = 0x1000, scoped, tag = 'scratch operand']
  %s0 = inlined_call_operand.hbm [shape: f32[2,8,32], index: 0, kind: input, shape index: {}]
  %s1 = inlined_call_operand.hbm [shape: f32[2,8,32], index: 1, kind: input, shape index: {}]
  %s2 = inlined_call_operand.hbm [shape: f32[2,8,32], index: 2, kind: input, shape index: {}]
  %s3 = inlined_call_operand.hbm [shape: f32[1,32,32], index: 3, kind: input, shape index: {}]
  %s4 = inlined_call_operand.vmem [shape: f32[1,1,32], index: 4, kind: input, shape index: {}]
  %s5 = inlined_call_operand.hbm [shape: f32[1,32,32], index: 5, kind: input, shape index: {}]
  %s6 = inlined_call_operand.vmem [shape: f32[1,1,32], index: 6, kind: input, shape index: {}]
  %s7 = inlined_call_operand.hbm [shape: f32[1,32,32], index: 7, kind: input, shape index: {}]
  %s8 = inlined_call_operand.vmem [shape: f32[1,1,32], index: 8, kind: input, shape index: {}]
  %s9 = inlined_call_operand.hbm [shape: f32[1,32,32], index: 9, kind: input, shape index: {}]
  %s10 = inlined_call_operand.vmem [shape: f32[1,32], index: 10, kind: input, shape index: {}]
  %s11 = inlined_call_operand.hbm [shape: f32[2,8,32], index: 11, kind: output, shape index: {0}]
  %s12 = inlined_call_operand.hbm [shape: f32[2,4,8,8], index: 12, kind: output, shape index: {1}]
  %13 = xla_tuple %s11, %s12
  %s14 = sld [smem:[#allocation0]]
  $region121: #{tpu_custom_call.1} parent=0
    _
  %s16 = ssub.s32 1, %s14
  %s17 = scalar_select 0, %s16, %s14
  $region1: #{tpu_custom_call.1} parent=0
    #allocation4 [shape = 'u8[8192]{0}', space=vmem, size = 0x2000, scoped, tag = 'input window, operand 0']
    #allocation5 [shape = 's32[2]{0}', space=sflag, size = 0x8, scoped, tag = 'scoped memory for tpu_custom_call.1']
    #allocation6 [shape = 's32[2]{0}', space=sflag, size = 0x8, scoped, tag = 'scoped memory for tpu_custom_call.1']
    #allocation7 [shape = 'u8[8192]{0}', space=vmem, size = 0x2000, scoped, tag = 'input window, operand 1']
    #allocation8 [shape = 's32[2]{0}', space=sflag, size = 0x8, scoped, tag = 'scoped memory for tpu_custom_call.1']
    #allocation9 [shape = 'u8[8192]{0}', space=vmem, size = 0x2000, scoped, tag = 'input window, operand 2']
    #allocation10 [shape = 'u8[16384]{0}', space=vmem, size = 0x4000, scoped, tag = 'input window, operand 3, single buffered']
    #allocation11 [shape = 's32[1]{0}', space=sflag, size = 0x4, scoped, tag = 'scoped memory for tpu_custom_call.1']
    #allocation12 [shape = 'u8[16384]{0}', space=vmem, size = 0x4000, scoped, tag = 'input window, operand 5, single buffered']
    #allocation13 [shape = 'u8[16384]{0}', space=vmem, size = 0x4000, scoped, tag = 'input window, operand 7, single buffered']
    #allocation14 [shape = 's32[1]{0}', space=sflag, size = 0x4, scoped, tag = 'scoped memory for tpu_custom_call.1']
    #allocation15 [shape = 'u8[16384]{0}', space=vmem, size = 0x4000, scoped, tag = 'input window, operand 9, single buffered']
    #allocation16 [shape = 'u8[8192]{0}', space=vmem, size = 0x2000, scoped, tag = 'output window, operand 0']
    #allocation17 [shape = 'u8[32768]{0}', space=vmem, size = 0x8000, scoped, tag = 'output window, operand 1']
    #allocation18 [shape = 's32[2]{0}', space=sflag, size = 0x8, scoped, tag = 'scoped memory for tpu_custom_call.1']
    %18 = vsyncpa [#allocation5], 0
    %s19 = scalar_lea.sflag [#allocation5], 1
    %20 = vsyncpa %s19, 0
    %21 = vsyncpa [#allocation8], 0
    %s22 = scalar_lea.sflag [#allocation8], 1
    %23 = vsyncpa %s22, 0
    %24 = vsyncpa [#allocation11], 0
    %25 = vsyncpa [#allocation14], 0
    %26 = vsyncpa [#allocation6], 0
    %s27 = scalar_lea.sflag [#allocation6], 1
    %28 = vsyncpa %s27, 0
    %29 = vsyncpa [#allocation18], 0
    %s30 = scalar_lea.sflag [#allocation18], 1
    %31 = vsyncpa %s30, 0
    loop: start=0, step=1, limit=4
    $region2: #{tpu_custom_call.1} parent=1 // loop_pre_header
      _
    $region3: #{tpu_custom_call.1} parent=1 // loop_header
      %s33 = sphi 0, %s37
      %p34 = scmp.ge.s32.totalorder %s33, 4
      %s40 = sphi 0, %s59
      %s41 = sphi 0, %s55
      %s42 = sphi 0, %s51
      %s43 = sphi 0, %s40
      %s44 = sphi 0, %s41
      %s45 = sphi 0, %s42
      %s46 = sphi 0, %s43
      %s47 = sphi 0, %s44
      %s48 = sphi 0, %s45
      %s64 = sphi 0, %s66
      %s67 = sphi 0, %s64
      %s68 = sphi 0, %s67
      %s84 = sphi 0, %s68
      %s90 = sphi 0, %s92
      %s93 = sphi 0, %s90
      %s94 = sphi 0, %s93
      %s110 = sphi 0, %s94
      %s116 = sphi 0, %s118
      %s119 = sphi 0, %s116
      %s120 = sphi 0, %s119
      %s136 = sphi 0, %s120
      %s142 = sphi 0, %s144
      %s145 = sphi 0, %s142
      %s146 = sphi 0, %s145
      %s162 = sphi 0, %s146
      %s168 = sphi 0, %s170
      %s171 = sphi 0, %s168
      %s172 = sphi 0, %s171
      %s188 = sphi 0, %s172
      %s194 = sphi 0, %s196
      %s197 = sphi 0, %s194
      %s198 = sphi 0, %s197
      %s214 = sphi 0, %s198
      %s220 = sphi 0, %s222
      %s223 = sphi 0, %s220
      %s224 = sphi 0, %s223
      %s240 = sphi 0, %s224
      %s246 = sphi 0, %s248
      %s249 = sphi 0, %s246
      %s250 = sphi 0, %s249
      %s266 = sphi 0, %s250
      %s272 = sphi 0, %s274
      %s275 = sphi 0, %s272
      %s276 = sphi 0, %s275
      %s292 = sphi 0, %s276
      %s298 = sphi 0, %s300
      %s301 = sphi 0, %s298
      %s302 = sphi 0, %s301
      %s318 = sphi 0, %s302
      %s322 = sphi 0, %s322
      %s324 = sphi 0, %s322
      %s325 = sphi 0, %s324
      %s339 = sphi 0, %s325
      %s347 = sphi 0, %s349
      %s350 = sphi 0, %s347
      %s351 = sphi 0, %s350
      %s367 = sphi 0, %s351
      %s377 = sphi 0, %s379
      %s380 = sphi 0, %s377
      %s381 = sphi 0, %s380
      %s397 = sphi 0, %s381
    $region4: #{tpu_custom_call.1} parent=1 // loop_header_branch
      %36 = sbr.rel (%p34) target = $region8
    $region5: #{tpu_custom_call.1} parent=1 // loop_body
      %s38 = ssub.s32 %s33, 1
      %s39 = ssub.s32 %s33, 2
      %s49 = sadd.s32 1, %s42
      %p50 = scmp.ge.s32.totalorder %s49, 1
      %s51 = scalar_select %p50, 0, %s49
      %s52 = sadd.s32 1, %s41
      %s53 = scalar_select %p50, %s52, %s41
      %p54 = scmp.ge.s32.totalorder %s53, 1
      %s55 = scalar_select %p54, 0, %s53
      %s56 = sadd.s32 1, %s40
      %s57 = scalar_select %p54, %s56, %s40
      %p58 = scmp.ge.s32.totalorder %s57, 2
      %s59 = scalar_select %p58, 0, %s57
      %s60 = ssub.s32 %s40, %s59
      %s61 = ssub.s32 %s41, %s55
      %s62 = sor.u32 %s60, %s61
      %p63 = scmp.eq.s32.totalorder %s62, 0
      %s65 = sadd.s32 %s64, 1
      %s66 = scalar_select %p63, %s64, %s65
      %p69 = pneg %p63
      %p70 = scmp.eq.s32.totalorder %s33, 1
      %p71 = por %p69, %p70
      %p72 = scmp.ne.s32.totalorder %s64, %s67
      %p73 = scmp.eq.s32.totalorder %s33, 0
      %p74 = por %p72, %p73
      %p75 = scmp.ne.s32.totalorder %s64, %s67
      %p76 = scmp.eq.s32.totalorder %s38, 1
      %p77 = por %p75, %p76
      %p78 = scmp.ne.s32.totalorder %s67, %s68
      %p79 = scmp.eq.s32.totalorder %s38, 0
      %p80 = por %p78, %p79
      %p81 = scmp.ne.s32.totalorder %s67, %s68
      %p82 = scmp.eq.s32.totalorder %s39, 1
      %p83 = por %p81, %p82
      %p85 = scmp.ne.s32.totalorder %s68, %s84
      %p86 = scmp.eq.s32.totalorder %s39, 0
      %p87 = por %p85, %p86
      %s88 = ssub.s32 %s40, %s59
      %p89 = scmp.eq.s32.totalorder %s88, 0
      %s91 = sadd.s32 %s90, 1
      %s92 = scalar_select %p89, %s90, %s91
      %p95 = pneg %p89
      %p96 = scmp.eq.s32.totalorder %s33, 1
      %p97 = por %p95, %p96
      %p98 = scmp.ne.s32.totalorder %s90, %s93
      %p99 = scmp.eq.s32.totalorder %s33, 0
      %p100 = por %p98, %p99
      %p101 = scmp.ne.s32.totalorder %s90, %s93
      %p102 = scmp.eq.s32.totalorder %s38, 1
      %p103 = por %p101, %p102
      %p104 = scmp.ne.s32.totalorder %s93, %s94
      %p105 = scmp.eq.s32.totalorder %s38, 0
      %p106 = por %p104, %p105
      %p107 = scmp.ne.s32.totalorder %s93, %s94
      %p108 = scmp.eq.s32.totalorder %s39, 1
      %p109 = por %p107, %p108
      %p111 = scmp.ne.s32.totalorder %s94, %s110
      %p112 = scmp.eq.s32.totalorder %s39, 0
      %p113 = por %p111, %p112
      %s114 = ssub.s32 %s40, %s59
      %p115 = scmp.eq.s32.totalorder %s114, 0
      %s117 = sadd.s32 %s116, 1
      %s118 = scalar_select %p115, %s116, %s117
      %p121 = pneg %p115
      %p122 = scmp.eq.s32.totalorder %s33, 1
      %p123 = por %p121, %p122
      %p124 = scmp.ne.s32.totalorder %s116, %s119
      %p125 = scmp.eq.s32.totalorder %s33, 0
      %p126 = por %p124, %p125
      %p127 = scmp.ne.s32.totalorder %s116, %s119
      %p128 = scmp.eq.s32.totalorder %s38, 1
      %p129 = por %p127, %p128
      %p130 = scmp.ne.s32.totalorder %s119, %s120
      %p131 = scmp.eq.s32.totalorder %s38, 0
      %p132 = por %p130, %p131
      %p133 = scmp.ne.s32.totalorder %s119, %s120
      %p134 = scmp.eq.s32.totalorder %s39, 1
      %p135 = por %p133, %p134
      %p137 = scmp.ne.s32.totalorder %s120, %s136
      %p138 = scmp.eq.s32.totalorder %s39, 0
      %p139 = por %p137, %p138
      %s140 = ssub.s32 %s42, %s51
      %p141 = scmp.eq.s32.totalorder %s140, 0
      %s143 = sadd.s32 %s142, 1
      %s144 = scalar_select %p141, %s142, %s143
      %p147 = pneg %p141
      %p148 = scmp.eq.s32.totalorder %s33, 1
      %p149 = por %p147, %p148
      %p150 = scmp.ne.s32.totalorder %s142, %s145
      %p151 = scmp.eq.s32.totalorder %s33, 0
      %p152 = por %p150, %p151
      %p153 = scmp.ne.s32.totalorder %s142, %s145
      %p154 = scmp.eq.s32.totalorder %s38, 1
      %p155 = por %p153, %p154
      %p156 = scmp.ne.s32.totalorder %s145, %s146
      %p157 = scmp.eq.s32.totalorder %s38, 0
      %p158 = por %p156, %p157
      %p159 = scmp.ne.s32.totalorder %s145, %s146
      %p160 = scmp.eq.s32.totalorder %s39, 1
      %p161 = por %p159, %p160
      %p163 = scmp.ne.s32.totalorder %s146, %s162
      %p164 = scmp.eq.s32.totalorder %s39, 0
      %p165 = por %p163, %p164
      %s166 = ssub.s32 %s42, %s51
      %p167 = scmp.eq.s32.totalorder %s166, 0
      %s169 = sadd.s32 %s168, 1
      %s170 = scalar_select %p167, %s168, %s169
      %p173 = pneg %p167
      %p174 = scmp.eq.s32.totalorder %s33, 1
      %p175 = por %p173, %p174
      %p176 = scmp.ne.s32.totalorder %s168, %s171
      %p177 = scmp.eq.s32.totalorder %s33, 0
      %p178 = por %p176, %p177
      %p179 = scmp.ne.s32.totalorder %s168, %s171
      %p180 = scmp.eq.s32.totalorder %s38, 1
      %p181 = por %p179, %p180
      %p182 = scmp.ne.s32.totalorder %s171, %s172
      %p183 = scmp.eq.s32.totalorder %s38, 0
      %p184 = por %p182, %p183
      %p185 = scmp.ne.s32.totalorder %s171, %s172
      %p186 = scmp.eq.s32.totalorder %s39, 1
      %p187 = por %p185, %p186
      %p189 = scmp.ne.s32.totalorder %s172, %s188
      %p190 = scmp.eq.s32.totalorder %s39, 0
      %p191 = por %p189, %p190
      %s192 = ssub.s32 %s42, %s51
      %p193 = scmp.eq.s32.totalorder %s192, 0
      %s195 = sadd.s32 %s194, 1
      %s196 = scalar_select %p193, %s194, %s195
      %p199 = pneg %p193
      %p200 = scmp.eq.s32.totalorder %s33, 1
      %p201 = por %p199, %p200
      %p202 = scmp.ne.s32.totalorder %s194, %s197
      %p203 = scmp.eq.s32.totalorder %s33, 0
      %p204 = por %p202, %p203
      %p205 = scmp.ne.s32.totalorder %s194, %s197
      %p206 = scmp.eq.s32.totalorder %s38, 1
      %p207 = por %p205, %p206
      %p208 = scmp.ne.s32.totalorder %s197, %s198
      %p209 = scmp.eq.s32.totalorder %s38, 0
      %p210 = por %p208, %p209
      %p211 = scmp.ne.s32.totalorder %s197, %s198
      %p212 = scmp.eq.s32.totalorder %s39, 1
      %p213 = por %p211, %p212
      %p215 = scmp.ne.s32.totalorder %s198, %s214
      %p216 = scmp.eq.s32.totalorder %s39, 0
      %p217 = por %p215, %p216
      %s218 = ssub.s32 %s42, %s51
      %p219 = scmp.eq.s32.totalorder %s218, 0
      %s221 = sadd.s32 %s220, 1
      %s222 = scalar_select %p219, %s220, %s221
      %p225 = pneg %p219
      %p226 = scmp.eq.s32.totalorder %s33, 1
      %p227 = por %p225, %p226
      %p228 = scmp.ne.s32.totalorder %s220, %s223
      %p229 = scmp.eq.s32.totalorder %s33, 0
      %p230 = por %p228, %p229
      %p231 = scmp.ne.s32.totalorder %s220, %s223
      %p232 = scmp.eq.s32.totalorder %s38, 1
      %p233 = por %p231, %p232
      %p234 = scmp.ne.s32.totalorder %s223, %s224
      %p235 = scmp.eq.s32.totalorder %s38, 0
      %p236 = por %p234, %p235
      %p237 = scmp.ne.s32.totalorder %s223, %s224
      %p238 = scmp.eq.s32.totalorder %s39, 1
      %p239 = por %p237, %p238
      %p241 = scmp.ne.s32.totalorder %s224, %s240
      %p242 = scmp.eq.s32.totalorder %s39, 0
      %p243 = por %p241, %p242
      %s244 = ssub.s32 %s42, %s51
      %p245 = scmp.eq.s32.totalorder %s244, 0
      %s247 = sadd.s32 %s246, 1
      %s248 = scalar_select %p245, %s246, %s247
      %p251 = pneg %p245
      %p252 = scmp.eq.s32.totalorder %s33, 1
      %p253 = por %p251, %p252
      %p254 = scmp.ne.s32.totalorder %s246, %s249
      %p255 = scmp.eq.s32.totalorder %s33, 0
      %p256 = por %p254, %p255
      %p257 = scmp.ne.s32.totalorder %s246, %s249
      %p258 = scmp.eq.s32.totalorder %s38, 1
      %p259 = por %p257, %p258
      %p260 = scmp.ne.s32.totalorder %s249, %s250
      %p261 = scmp.eq.s32.totalorder %s38, 0
      %p262 = por %p260, %p261
      %p263 = scmp.ne.s32.totalorder %s249, %s250
      %p264 = scmp.eq.s32.totalorder %s39, 1
      %p265 = por %p263, %p264
      %p267 = scmp.ne.s32.totalorder %s250, %s266
      %p268 = scmp.eq.s32.totalorder %s39, 0
      %p269 = por %p267, %p268
      %s270 = ssub.s32 %s42, %s51
      %p271 = scmp.eq.s32.totalorder %s270, 0
      %s273 = sadd.s32 %s272, 1
      %s274 = scalar_select %p271, %s272, %s273
      %p277 = pneg %p271
      %p278 = scmp.eq.s32.totalorder %s33, 1
      %p279 = por %p277, %p278
      %p280 = scmp.ne.s32.totalorder %s272, %s275
      %p281 = scmp.eq.s32.totalorder %s33, 0
      %p282 = por %p280, %p281
      %p283 = scmp.ne.s32.totalorder %s272, %s275
      %p284 = scmp.eq.s32.totalorder %s38, 1
      %p285 = por %p283, %p284
      %p286 = scmp.ne.s32.totalorder %s275, %s276
      %p287 = scmp.eq.s32.totalorder %s38, 0
      %p288 = por %p286, %p287
      %p289 = scmp.ne.s32.totalorder %s275, %s276
      %p290 = scmp.eq.s32.totalorder %s39, 1
      %p291 = por %p289, %p290
      %p293 = scmp.ne.s32.totalorder %s276, %s292
      %p294 = scmp.eq.s32.totalorder %s39, 0
      %p295 = por %p293, %p294
      %s296 = ssub.s32 %s42, %s51
      %p297 = scmp.eq.s32.totalorder %s296, 0
      %s299 = sadd.s32 %s298, 1
      %s300 = scalar_select %p297, %s298, %s299
      %p303 = pneg %p297
      %p304 = scmp.eq.s32.totalorder %s33, 1
      %p305 = por %p303, %p304
      %p306 = scmp.ne.s32.totalorder %s298, %s301
      %p307 = scmp.eq.s32.totalorder %s33, 0
      %p308 = por %p306, %p307
      %p309 = scmp.ne.s32.totalorder %s298, %s301
      %p310 = scmp.eq.s32.totalorder %s38, 1
      %p311 = por %p309, %p310
      %p312 = scmp.ne.s32.totalorder %s301, %s302
      %p313 = scmp.eq.s32.totalorder %s38, 0
      %p314 = por %p312, %p313
      %p315 = scmp.ne.s32.totalorder %s301, %s302
      %p316 = scmp.eq.s32.totalorder %s39, 1
      %p317 = por %p315, %p316
      %p319 = scmp.ne.s32.totalorder %s302, %s318
      %p320 = scmp.eq.s32.totalorder %s39, 0
      %p321 = por %p319, %p320
      %s323 = sadd.s32 %s322, 1
      %p326 = scmp.eq.s32.totalorder %s33, 1
      %p327 = scmp.ne.s32.totalorder %s322, %s324
      %p328 = scmp.eq.s32.totalorder %s33, 0
      %p329 = por %p327, %p328
      %p330 = scmp.ne.s32.totalorder %s322, %s324
      %p331 = scmp.eq.s32.totalorder %s38, 1
      %p332 = por %p330, %p331
      %p333 = scmp.ne.s32.totalorder %s324, %s325
      %p334 = scmp.eq.s32.totalorder %s38, 0
      %p335 = por %p333, %p334
      %p336 = scmp.ne.s32.totalorder %s324, %s325
      %p337 = scmp.eq.s32.totalorder %s39, 1
      %p338 = por %p336, %p337
      %p340 = scmp.ne.s32.totalorder %s325, %s339
      %p341 = scmp.eq.s32.totalorder %s39, 0
      %p342 = por %p340, %p341
      %s343 = ssub.s32 %s40, %s59
      %s344 = ssub.s32 %s41, %s55
      %s345 = sor.u32 %s343, %s344
      %p346 = scmp.eq.s32.totalorder %s345, 0
      %s348 = sadd.s32 %s347, 1
      %s349 = scalar_select %p346, %s347, %s348
      %p352 = pneg %p346
      %p353 = scmp.eq.s32.totalorder %s33, 1
      %p354 = por %p352, %p353
      %p355 = scmp.ne.s32.totalorder %s347, %s350
      %p356 = scmp.eq.s32.totalorder %s33, 0
      %p357 = por %p355, %p356
      %p358 = scmp.ne.s32.totalorder %s347, %s350
      %p359 = scmp.eq.s32.totalorder %s38, 1
      %p360 = por %p358, %p359
      %p361 = scmp.ne.s32.totalorder %s350, %s351
      %p362 = scmp.eq.s32.totalorder %s38, 0
      %p363 = por %p361, %p362
      %p364 = scmp.ne.s32.totalorder %s350, %s351
      %p365 = scmp.eq.s32.totalorder %s39, 1
      %p366 = por %p364, %p365
      %p368 = scmp.ne.s32.totalorder %s351, %s367
      %p369 = scmp.eq.s32.totalorder %s39, 0
      %p370 = por %p368, %p369
      %s371 = ssub.s32 %s40, %s59
      %s372 = ssub.s32 %s42, %s51
      %s373 = sor.u32 %s371, %s372
      %s374 = ssub.s32 %s41, %s55
      %s375 = sor.u32 %s373, %s374
      %p376 = scmp.eq.s32.totalorder %s375, 0
      %s378 = sadd.s32 %s377, 1
      %s379 = scalar_select %p376, %s377, %s378
      %p382 = pneg %p376
      %p383 = scmp.eq.s32.totalorder %s33, 1
      %p384 = por %p382, %p383
      %p385 = scmp.ne.s32.totalorder %s377, %s380
      %p386 = scmp.eq.s32.totalorder %s33, 0
      %p387 = por %p385, %p386
      %p388 = scmp.ne.s32.totalorder %s377, %s380
      %p389 = scmp.eq.s32.totalorder %s38, 1
      %p390 = por %p388, %p389
      %p391 = scmp.ne.s32.totalorder %s380, %s381
      %p392 = scmp.eq.s32.totalorder %s38, 0
      %p393 = por %p391, %p392
      %p394 = scmp.ne.s32.totalorder %s380, %s381
      %p395 = scmp.eq.s32.totalorder %s39, 1
      %p396 = por %p394, %p395
      %p398 = scmp.ne.s32.totalorder %s381, %s397
      %p399 = scmp.eq.s32.totalorder %s39, 0
      %p400 = por %p398, %p399
      %p401 = scmp.le.s32.totalorder 1, %s33
      %p402 = scmp.lt.s32.totalorder %s33, 3
      %p403 = pnand %p401, %p402
      %p404 = pneg %p403
      // Predicated region
      $region9: #{tpu_custom_call.1} parent=5 // pred_check
        _
      $region10: #{tpu_custom_call.1} parent=5 // pred_check_branch
        %406 = sbr.rel (%p403) target = $region12
      $region11: #{tpu_custom_call.1} parent=5 // pred_region
        %s407 = ssub.s32 %s33, 1
        // Predicated region
        $region13: #{tpu_custom_call.1} parent=11 // pred_check
          %p408 = pneg %p158
        $region14: #{tpu_custom_call.1} parent=11 // pred_check_branch
          %410 = sbr.rel (%p408) target = $region16
        $region15: #{tpu_custom_call.1} parent=11 // pred_region
          %s412 = ssub.s32 512, 512
          %413 = vsyncadd [#allocation11], %s412
          %s414 = smul.addr %s45, 4
          %s415 = smul.addr %s414, 128
          %s416 = scalar_lea.hbm %s3, %s415
          %s417 = sshll.u32 [#allocation10], 4
          %s418 = int_to_ptr.vmem [resolvable:$true] %s417
          %423 = dma.hbm_to_vmem [thread:$0]  %s416, 512, %s418, [#allocation11], 128, 128, 8
        $region16: #{tpu_custom_call.1} parent=11 // pred_fallthru
          _
        // Predicated region
        $region17: #{tpu_custom_call.1} parent=11 // pred_check
          %p424 = pneg %p184
        $region18: #{tpu_custom_call.1} parent=11 // pred_check_branch
          %426 = sbr.rel (%p424) target = $region20
        $region19: #{tpu_custom_call.1} parent=11 // pred_region
          %p427 = scmp.lt.s32.totalorder %s45, 0
          %s428 = scalar_select %p427, %s45, 0
          %s429 = scalar_lea.vmem %s4, %s428
        $region20: #{tpu_custom_call.1} parent=11 // pred_fallthru
          _
        // Predicated region
        $region21: #{tpu_custom_call.1} parent=11 // pred_check
          %p430 = pneg %p210
        $region22: #{tpu_custom_call.1} parent=11 // pred_check_branch
          %432 = sbr.rel (%p430) target = $region24
        $region23: #{tpu_custom_call.1} parent=11 // pred_region
          %s434 = ssub.s32 512, 512
          %435 = vsyncadd [#allocation11], %s434
          %s436 = smul.addr %s45, 4
          %s437 = smul.addr %s436, 128
          %s438 = scalar_lea.hbm %s5, %s437
          %s439 = sshll.u32 [#allocation12], 4
          %s440 = int_to_ptr.vmem [resolvable:$true] %s439
          %445 = dma.hbm_to_vmem [thread:$0]  %s438, 512, %s440, [#allocation11], 128, 128, 8
        $region24: #{tpu_custom_call.1} parent=11 // pred_fallthru
          _
        // Predicated region
        $region25: #{tpu_custom_call.1} parent=11 // pred_check
          %p446 = pneg %p236
        $region26: #{tpu_custom_call.1} parent=11 // pred_check_branch
          %448 = sbr.rel (%p446) target = $region28
        $region27: #{tpu_custom_call.1} parent=11 // pred_region
          %p449 = scmp.lt.s32.totalorder %s45, 0
          %s450 = scalar_select %p449, %s45, 0
          %s451 = scalar_lea.vmem %s6, %s450
        $region28: #{tpu_custom_call.1} parent=11 // pred_fallthru
          _
        // Predicated region
        $region29: #{tpu_custom_call.1} parent=11 // pred_check
          %p452 = pneg %p262
        $region30: #{tpu_custom_call.1} parent=11 // pred_check_branch
          %454 = sbr.rel (%p452) target = $region32
        $region31: #{tpu_custom_call.1} parent=11 // pred_region
          %s456 = ssub.s32 512, 512
          %457 = vsyncadd [#allocation14], %s456
          %s458 = smul.addr %s45, 4
          %s459 = smul.addr %s458, 128
          %s460 = scalar_lea.hbm %s7, %s459
          %s461 = sshll.u32 [#allocation13], 4
          %s462 = int_to_ptr.vmem [resolvable:$true] %s461
          %467 = dma.hbm_to_vmem [thread:$0]  %s460, 512, %s462, [#allocation14], 128, 128, 8
        $region32: #{tpu_custom_call.1} parent=11 // pred_fallthru
          _
        // Predicated region
        $region33: #{tpu_custom_call.1} parent=11 // pred_check
          %p468 = pneg %p288
        $region34: #{tpu_custom_call.1} parent=11 // pred_check_branch
          %470 = sbr.rel (%p468) target = $region36
        $region35: #{tpu_custom_call.1} parent=11 // pred_region
          %p471 = scmp.lt.s32.totalorder %s45, 0
          %s472 = scalar_select %p471, %s45, 0
          %s473 = scalar_lea.vmem %s8, %s472
        $region36: #{tpu_custom_call.1} parent=11 // pred_fallthru
          _
        // Predicated region
        $region37: #{tpu_custom_call.1} parent=11 // pred_check
          %p474 = pneg %p314
        $region38: #{tpu_custom_call.1} parent=11 // pred_check_branch
          %476 = sbr.rel (%p474) target = $region40
        $region39: #{tpu_custom_call.1} parent=11 // pred_region
          %s478 = ssub.s32 512, 512
          %479 = vsyncadd [#allocation14], %s478
          %s480 = smul.addr %s45, 4
          %s481 = smul.addr %s480, 128
          %s482 = scalar_lea.hbm %s9, %s481
          %s483 = sshll.u32 [#allocation15], 4
          %s484 = int_to_ptr.vmem [resolvable:$true] %s483
          %489 = dma.hbm_to_vmem [thread:$0]  %s482, 512, %s484, [#allocation14], 128, 128, 8
        $region40: #{tpu_custom_call.1} parent=11 // pred_fallthru
          _
        // Predicated region
        $region41: #{tpu_custom_call.1} parent=11 // pred_check
          %p490 = pneg %p335
        $region42: #{tpu_custom_call.1} parent=11 // pred_check_branch
          %492 = sbr.rel (%p490) target = $region44
        $region43: #{tpu_custom_call.1} parent=11 // pred_region
          _
        $region44: #{tpu_custom_call.1} parent=11 // pred_fallthru
          _
      $region12: #{tpu_custom_call.1} parent=5 // pred_fallthru
        _
      %p493 = scmp.lt.s32.totalorder %s33, 2
      // Predicated region
      $region45: #{tpu_custom_call.1} parent=5 // pred_check
        %p494 = pneg %p493
      $region46: #{tpu_custom_call.1} parent=5 // pred_check_branch
        %496 = sbr.rel (%p494) target = $region48
      $region47: #{tpu_custom_call.1} parent=5 // pred_region
        // Predicated region
        $region49: #{tpu_custom_call.1} parent=47 // pred_check
          %p497 = pneg %p74
        $region50: #{tpu_custom_call.1} parent=47 // pred_check_branch
          %499 = sbr.rel (%p497) target = $region52
        $region51: #{tpu_custom_call.1} parent=47 // pred_region
          %s500 = sand.u32 %s64, 1
          %s501 = scalar_lea.sflag [#allocation5], %s500
          %s502 = sand.u32 %s64, 1
          %s503 = smul.addr %s502, 8
          %s504 = scalar_lea.vmem [#allocation4], %s503
          %s506 = ssub.s32 128, 128
          %507 = vsyncadd %s501, %s506
          %s508 = sadd.s32 %s41, %s40
          %s509 = smul.addr %s508, 128
          %s510 = scalar_lea.hbm %s0, %s509
          %s512 = sshll.u32 %s504, 4
          %s513 = int_to_ptr.vmem [resolvable:$true] %s512
          %515 = dma.hbm_to_vmem [thread:$0]  %s510, 128, %s513, %s501
        $region52: #{tpu_custom_call.1} parent=47 // pred_fallthru
          _
        // Predicated region
        $region53: #{tpu_custom_call.1} parent=47 // pred_check
          %p516 = pneg %p100
        $region54: #{tpu_custom_call.1} parent=47 // pred_check_branch
          %518 = sbr.rel (%p516) target = $region56
        $region55: #{tpu_custom_call.1} parent=47 // pred_region
          %s519 = sand.u32 %s33, 1
          %s520 = scalar_lea.sflag [#allocation8], %s519
          %s521 = sand.u32 %s90, 1
          %s522 = smul.addr %s521, 8
          %s523 = scalar_lea.vmem [#allocation7], %s522
          %s525 = ssub.s32 128, 128
          %526 = vsyncadd %s520, %s525
          %s527 = smul.addr %s40, 128
          %s528 = scalar_lea.hbm %s1, %s527
          %s530 = sshll.u32 %s523, 4
          %s531 = int_to_ptr.vmem [resolvable:$true] %s530
          %533 = dma.hbm_to_vmem [thread:$0]  %s528, 128, %s531, %s520
        $region56: #{tpu_custom_call.1} parent=47 // pred_fallthru
          _
        // Predicated region
        $region57: #{tpu_custom_call.1} parent=47 // pred_check
          %p534 = pneg %p126
        $region58: #{tpu_custom_call.1} parent=47 // pred_check_branch
          %536 = sbr.rel (%p534) target = $region60
        $region59: #{tpu_custom_call.1} parent=47 // pred_region
          %s537 = sand.u32 %s33, 1
          %s538 = scalar_lea.sflag [#allocation8], %s537
          %s539 = sand.u32 %s116, 1
          %s540 = smul.addr %s539, 8
          %s541 = scalar_lea.vmem [#allocation9], %s540
          %s543 = ssub.s32 128, 128
          %544 = vsyncadd %s538, %s543
          %s545 = smul.addr %s40, 128
          %s546 = scalar_lea.hbm %s2, %s545
          %s548 = sshll.u32 %s541, 4
          %s549 = int_to_ptr.vmem [resolvable:$true] %s548
          %551 = dma.hbm_to_vmem [thread:$0]  %s546, 128, %s549, %s538
        $region60: #{tpu_custom_call.1} parent=47 // pred_fallthru
          _
      $region48: #{tpu_custom_call.1} parent=5 // pred_fallthru
        _
      %p552 = scmp.le.s32.totalorder 1, %s33
      %p553 = scmp.lt.s32.totalorder %s33, 3
      %p554 = pnand %p552, %p553
      %p555 = pneg %p554
      // Predicated region
      $region61: #{tpu_custom_call.1} parent=5 // pred_check
        _
      $region62: #{tpu_custom_call.1} parent=5 // pred_check_branch
        %557 = sbr.rel (%p554) target = $region64
      $region63: #{tpu_custom_call.1} parent=5 // pred_region
        %s558 = ssub.s32 %s33, 1
        %s559 = sand.u32 %s67, 1
        %s560 = scalar_lea.sflag [#allocation5], %s559
        %s561 = sand.u32 %s67, 1
        %s562 = smul.addr %s561, 8
        %s563 = scalar_lea.vmem [#allocation4], %s562
        // Predicated region
        $region65: #{tpu_custom_call.1} parent=63 // pred_check
          %p564 = pneg %p80
        $region66: #{tpu_custom_call.1} parent=63 // pred_check_branch
          %566 = sbr.rel (%p564) target = $region68
        $region67: #{tpu_custom_call.1} parent=63 // pred_region
          %567 = dma.done %s560, 128
        $region68: #{tpu_custom_call.1} parent=63 // pred_fallthru
          _
        %s568 = sand.u32 %s38, 1
        %s569 = scalar_lea.sflag [#allocation8], %s568
        %s570 = sand.u32 %s93, 1
        %s571 = smul.addr %s570, 8
        %s572 = scalar_lea.vmem [#allocation7], %s571
        // Predicated region
        $region69: #{tpu_custom_call.1} parent=63 // pred_check
          %p573 = pneg %p106
        $region70: #{tpu_custom_call.1} parent=63 // pred_check_branch
          %575 = sbr.rel (%p573) target = $region72
        $region71: #{tpu_custom_call.1} parent=63 // pred_region
          %576 = dma.done %s569, 128
        $region72: #{tpu_custom_call.1} parent=63 // pred_fallthru
          _
        %s577 = sand.u32 %s38, 1
        %s578 = scalar_lea.sflag [#allocation8], %s577
        %s579 = sand.u32 %s119, 1
        %s580 = smul.addr %s579, 8
        %s581 = scalar_lea.vmem [#allocation9], %s580
        // Predicated region
        $region73: #{tpu_custom_call.1} parent=63 // pred_check
          %p582 = pneg %p132
        $region74: #{tpu_custom_call.1} parent=63 // pred_check_branch
          %584 = sbr.rel (%p582) target = $region76
        $region75: #{tpu_custom_call.1} parent=63 // pred_region
          %585 = dma.done %s578, 128
        $region76: #{tpu_custom_call.1} parent=63 // pred_fallthru
          _
        // Predicated region
        $region77: #{tpu_custom_call.1} parent=63 // pred_check
          %p586 = pneg %p158
        $region78: #{tpu_custom_call.1} parent=63 // pred_check_branch
          %588 = sbr.rel (%p586) target = $region80
        $region79: #{tpu_custom_call.1} parent=63 // pred_region
          %589 = dma.done [#allocation11], 512
        $region80: #{tpu_custom_call.1} parent=63 // pred_fallthru
          _
        // Predicated region
        $region81: #{tpu_custom_call.1} parent=63 // pred_check
          %p590 = pneg %p210
        $region82: #{tpu_custom_call.1} parent=63 // pred_check_branch
          %592 = sbr.rel (%p590) target = $region84
        $region83: #{tpu_custom_call.1} parent=63 // pred_region
          %593 = dma.done [#allocation11], 512
        $region84: #{tpu_custom_call.1} parent=63 // pred_fallthru
          _
        // Predicated region
        $region85: #{tpu_custom_call.1} parent=63 // pred_check
          %p594 = pneg %p262
        $region86: #{tpu_custom_call.1} parent=63 // pred_check_branch
          %596 = sbr.rel (%p594) target = $region88
        $region87: #{tpu_custom_call.1} parent=63 // pred_region
          %597 = dma.done [#allocation14], 512
        $region88: #{tpu_custom_call.1} parent=63 // pred_fallthru
          _
        // Predicated region
        $region89: #{tpu_custom_call.1} parent=63 // pred_check
          %p598 = pneg %p314
        $region90: #{tpu_custom_call.1} parent=63 // pred_check_branch
          %600 = sbr.rel (%p598) target = $region92
        $region91: #{tpu_custom_call.1} parent=63 // pred_region
          %601 = dma.done [#allocation14], 512
        $region92: #{tpu_custom_call.1} parent=63 // pred_fallthru
          _
        %s602 = sand.u32 %s67, 1
        %s603 = scalar_lea.sflag [#allocation5], %s602
        %s604 = sand.u32 %s67, 1
        %s605 = smul.addr %s604, 8
        %s606 = scalar_lea.vmem [#allocation4], %s605
        %p607 = pneg %p80
        %p608 = pneg %p77
        %s609 = sand.u32 %s38, 1
        %s610 = scalar_lea.sflag [#allocation8], %s609
        %s611 = sand.u32 %s93, 1
        %s612 = smul.addr %s611, 8
        %s613 = scalar_lea.vmem [#allocation7], %s612
        %p614 = pneg %p106
        %p615 = pneg %p103
        %s616 = sand.u32 %s38, 1
        %s617 = scalar_lea.sflag [#allocation8], %s616
        %s618 = sand.u32 %s119, 1
        %s619 = smul.addr %s618, 8
        %s620 = scalar_lea.vmem [#allocation9], %s619
        %p621 = pneg %p132
        %p622 = pneg %p129
        %p623 = pneg %p158
        %p624 = pneg %p155
        %p625 = scmp.lt.s32.totalorder %s45, 0
        %s626 = scalar_select %p625, %s45, 0
        %s627 = scalar_lea.vmem %s4, %s626
        %p628 = pneg %p184
        %p629 = pneg %p181
        %p630 = pneg %p210
        %p631 = pneg %p207
        %p632 = scmp.lt.s32.totalorder %s45, 0
        %s633 = scalar_select %p632, %s45, 0
        %s634 = scalar_lea.vmem %s6, %s633
        %p635 = pneg %p236
        %p636 = pneg %p233
        %p637 = pneg %p262
        %p638 = pneg %p259
        %p639 = scmp.lt.s32.totalorder %s45, 0
        %s640 = scalar_select %p639, %s45, 0
        %s641 = scalar_lea.vmem %s8, %s640
        %p642 = pneg %p288
        %p643 = pneg %p285
        %p644 = pneg %p314
        %p645 = pneg %p311
        %p646 = pneg %p335
        %p647 = pneg %p332
        %p648 = pneg %p363
        %p649 = pneg %p360
        %s650 = sand.u32 %s350, 1
        %s651 = scalar_lea.sflag [#allocation6], %s650
        %s652 = sand.u32 %s350, 1
        %s653 = smul.addr %s652, 8
        %s654 = scalar_lea.vmem [#allocation16], %s653
        %p655 = pneg %p393
        %p656 = pneg %p390
        %s657 = sand.u32 %s380, 1
        %s658 = scalar_lea.sflag [#allocation18], %s657
        %s659 = sand.u32 %s380, 1
        %s660 = smul.addr %s659, 32
        %s661 = scalar_lea.vmem [#allocation17], %s660
        %p662 = scmp.lt.s32.totalorder %s45, 0
        %s663 = scalar_select %p662, %s45, 0
        %s664 = scalar_lea.vmem %s4, %s663
        %p665 = scmp.lt.s32.totalorder %s45, 0
        %s666 = scalar_select %p665, %s45, 0
        %s667 = scalar_lea.vmem %s6, %s666
        %p668 = scmp.lt.s32.totalorder %s45, 0
        %s669 = scalar_select %p668, %s45, 0
        %s670 = scalar_lea.vmem %s8, %s669
        %s671 = smul.u32 4, %s45
        %p672 = scmp.eq.s32.totalorder %s45, 0
        // Predicated region
        $region93: #{tpu_custom_call.1} parent=63 // pred_check
          %p673 = pneg %p672
        $region94: #{tpu_custom_call.1} parent=63 // pred_check_branch
          %675 = sbr.rel (%p673) target = $region96
        $region95: #{tpu_custom_call.1} parent=63 // pred_region
          %vm676 = vcmask 261120
          %677 = vst.msk [vmem:[#allocation2] sm:$0xff] %vm676, 0.0
        $region96: #{tpu_custom_call.1} parent=63 // pred_fallthru
          _
        %v678 = vld [vmem:[%s563] sm:$0xff]
        %v679 = vld [vmem:[%s572] sm:$0xff]
        %v680 = vld [vmem:[%s581] sm:$0xff]
        %v681 = vld [vmem:[#allocation10] sm:$0xff]
        %v682 = vld [vmem:[#allocation10 + $0x8] sm:$0xff]
        %v683 = vld [vmem:[#allocation10 + $0x10] sm:$0xff]
        %v684 = vld [vmem:[#allocation10 + $0x18] sm:$0xff]
        %v685 = vld [vmem:[%s664] sm:$0x1]
        %v687 = vlaneseq
        %v688 = vshrl.u32 %v687, 7
        %v689 = vsub.s32 0, %v688
        %v690 = vrot.slane %v685, %v689
        %vm692 = vcmask 261120
        %v694 = vsel %vm692, %v678, 0
        %696 = vmatprep.subr.mxu0 0.0
        %697 = vmatpush1.msra.mxu0 0.0
        %698 = vmatprep.subr.mxu0 0.0
        %699 = vmatpush1.msra.mxu0 0.0
        %700 = vmatprep.subr.mxu0 0.0
        %701 = vmatpush1.msra.mxu0 0.0
        %702 = vmatprep.subr.mxu0 0.0
        %703 = vmatpush1.msra.mxu0 0.0
        %704 = vmatprep.subr.mxu0 0.0
        %705 = vmatpush1.msra.mxu0 0.0
        %706 = vmatprep.subr.mxu0 0.0
        %707 = vmatpush1.msra.mxu0 0.0
        %708 = vmatprep.subr.mxu0 0.0
        %709 = vmatpush1.msra.mxu0 0.0
        %710 = vmatprep.subr.mxu0 0.0
        %711 = vmatpush1.msra.mxu0 0.0
        %712 = vmatprep.subr.mxu0 0.0
        %713 = vmatpush1.msra.mxu0 0.0
        %714 = vmatprep.subr.mxu0 0.0
        %715 = vmatpush1.msra.mxu0 0.0
        %716 = vmatprep.subr.mxu0 0.0
        %717 = vmatpush1.msra.mxu0 0.0
        %718 = vmatprep.subr.mxu0 0.0
        %719 = vmatpush1.msra.mxu0 0.0
        %720 = vmatprep.subr.mxu0 0.0
        %721 = vmatpush1.msra.mxu0 %v684
        %722 = vmatprep.subr.mxu0 0.0
        %723 = vmatpush1.msra.mxu0 %v683
        %724 = vmatprep.subr.mxu0 0.0
        %725 = vmatpush1.msra.mxu0 %v682
        %726 = vmatprep.subr.mxu0 0.0
        %727 = vmatpush1.msra.mxu0 %v681
        %728 = vmatprep.subr.mxu0 0.0
        %729 = vmatpush2.msra.mxu0 0.0
        %730 = vmatprep.subr.mxu0 0.0
        %731 = vmatpush2.msra.mxu0 0.0
        %732 = vmatprep.subr.mxu0 0.0
        %733 = vmatpush2.msra.mxu0 0.0
        %734 = vmatprep.subr.mxu0 0.0
        %735 = vmatpush2.msra.mxu0 0.0
        %736 = vmatprep.subr.mxu0 0.0
        %737 = vmatpush2.msra.mxu0 0.0
        %738 = vmatprep.subr.mxu0 0.0
        %739 = vmatpush2.msra.mxu0 0.0
        %740 = vmatprep.subr.mxu0 0.0
        %741 = vmatpush2.msra.mxu0 0.0
        %742 = vmatprep.subr.mxu0 0.0
        %743 = vmatpush2.msra.mxu0 0.0
        %744 = vmatprep.subr.mxu0 0.0
        %745 = vmatpush2.msra.mxu0 0.0
        %746 = vmatprep.subr.mxu0 0.0
        %747 = vmatpush2.msra.mxu0 0.0
        %748 = vmatprep.subr.mxu0 0.0
        %749 = vmatpush2.msra.mxu0 0.0
        %750 = vmatprep.subr.mxu0 0.0
        %751 = vmatpush2.msra.mxu0 0.0
        %752 = vmatprep.subr.mxu0 0.0
        %753 = vmatpush2.msra.mxu0 0.0
        %754 = vmatprep.subr.mxu0 0.0
        %755 = vmatpush2.msra.mxu0 0.0
        %756 = vmatprep.subr.mxu0 0.0
        %757 = vmatpush2.msra.mxu0 0.0
        %758 = vmatprep.subr.mxu0 0.0
        %759 = vmatpush2.msra.mxu0 0.0
        %760 = vmatprep.mubr.f32.mxu0 0.0
        %761 = vmatmul.mubr.f32.gmra.mxu0 %v694
        %v762 = vpop.f32.mrf.mxu0
        %v763 = vadd.f32 %v690, %v762
        %v764 = vpop.f32.mrf.mxu0
        %765 = vdwg.mxu0
        %v766 = vld [vmem:[#allocation12] sm:$0xff]
        %v767 = vld [vmem:[#allocation12 + $0x8] sm:$0xff]
        %v768 = vld [vmem:[#allocation12 + $0x10] sm:$0xff]
        %v769 = vld [vmem:[#allocation12 + $0x18] sm:$0xff]
        %v770 = vld [vmem:[%s667] sm:$0x1]
        %v772 = vlaneseq
        %v773 = vshrl.u32 %v772, 7
        %v774 = vsub.s32 0, %v773
        %v775 = vrot.slane %v770, %v774
        %v778 = vsel %vm692, %v679, 0
        %780 = vmatprep.subr.mxu0 0.0
        %781 = vmatpush1.msra.mxu0 0.0
        %782 = vmatprep.subr.mxu0 0.0
        %783 = vmatpush1.msra.mxu0 0.0
        %784 = vmatprep.subr.mxu0 0.0
        %785 = vmatpush1.msra.mxu0 0.0
        %786 = vmatprep.subr.mxu0 0.0
        %787 = vmatpush1.msra.mxu0 0.0
        %788 = vmatprep.subr.mxu0 0.0
        %789 = vmatpush1.msra.mxu0 0.0
        %790 = vmatprep.subr.mxu0 0.0
        %791 = vmatpush1.msra.mxu0 0.0
        %792 = vmatprep.subr.mxu0 0.0
        %793 = vmatpush1.msra.mxu0 0.0
        %794 = vmatprep.subr.mxu0 0.0
        %795 = vmatpush1.msra.mxu0 0.0
        %796 = vmatprep.subr.mxu0 0.0
        %797 = vmatpush1.msra.mxu0 0.0
        %798 = vmatprep.subr.mxu0 0.0
        %799 = vmatpush1.msra.mxu0 0.0
        %800 = vmatprep.subr.mxu0 0.0
        %801 = vmatpush1.msra.mxu0 0.0
        %802 = vmatprep.subr.mxu0 0.0
        %803 = vmatpush1.msra.mxu0 0.0
        %804 = vmatprep.subr.mxu0 0.0
        %805 = vmatpush1.msra.mxu0 %v769
        %806 = vmatprep.subr.mxu0 0.0
        %807 = vmatpush1.msra.mxu0 %v768
        %808 = vmatprep.subr.mxu0 0.0
        %809 = vmatpush1.msra.mxu0 %v767
        %810 = vmatprep.subr.mxu0 0.0
        %811 = vmatpush1.msra.mxu0 %v766
        %812 = vmatprep.subr.mxu0 0.0
        %813 = vmatpush2.msra.mxu0 0.0
        %814 = vmatprep.subr.mxu0 0.0
        %815 = vmatpush2.msra.mxu0 0.0
        %816 = vmatprep.subr.mxu0 0.0
        %817 = vmatpush2.msra.mxu0 0.0
        %818 = vmatprep.subr.mxu0 0.0
        %819 = vmatpush2.msra.mxu0 0.0
        %820 = vmatprep.subr.mxu0 0.0
        %821 = vmatpush2.msra.mxu0 0.0
        %822 = vmatprep.subr.mxu0 0.0
        %823 = vmatpush2.msra.mxu0 0.0
        %824 = vmatprep.subr.mxu0 0.0
        %825 = vmatpush2.msra.mxu0 0.0
        %826 = vmatprep.subr.mxu0 0.0
        %827 = vmatpush2.msra.mxu0 0.0
        %828 = vmatprep.subr.mxu0 0.0
        %829 = vmatpush2.msra.mxu0 0.0
        %830 = vmatprep.subr.mxu0 0.0
        %831 = vmatpush2.msra.mxu0 0.0
        %832 = vmatprep.subr.mxu0 0.0
        %833 = vmatpush2.msra.mxu0 0.0
        %834 = vmatprep.subr.mxu0 0.0
        %835 = vmatpush2.msra.mxu0 0.0
        %836 = vmatprep.subr.mxu0 0.0
        %837 = vmatpush2.msra.mxu0 0.0
        %838 = vmatprep.subr.mxu0 0.0
        %839 = vmatpush2.msra.mxu0 0.0
        %840 = vmatprep.subr.mxu0 0.0
        %841 = vmatpush2.msra.mxu0 0.0
        %842 = vmatprep.subr.mxu0 0.0
        %843 = vmatpush2.msra.mxu0 0.0
        %844 = vmatprep.mubr.f32.mxu0 0.0
        %845 = vmatmul.mubr.f32.gmra.mxu0 %v778
        %v846 = vpop.f32.mrf.mxu0
        %v847 = vadd.f32 %v775, %v846
        %v848 = vpop.f32.mrf.mxu0
        %849 = vdwg.mxu0
        %v850 = vld [vmem:[#allocation13] sm:$0xff]
        %v851 = vld [vmem:[#allocation13 + $0x8] sm:$0xff]
        %v852 = vld [vmem:[#allocation13 + $0x10] sm:$0xff]
        %v853 = vld [vmem:[#allocation13 + $0x18] sm:$0xff]
        %v854 = vld [vmem:[%s670] sm:$0x1]
        %v856 = vlaneseq
        %v857 = vshrl.u32 %v856, 7
        %v858 = vsub.s32 0, %v857
        %v859 = vrot.slane %v854, %v858
        %v862 = vsel %vm692, %v680, 0
        %864 = vmatprep.subr.mxu0 0.0
        %865 = vmatpush1.msra.mxu0 0.0
        %866 = vmatprep.subr.mxu0 0.0
        %867 = vmatpush1.msra.mxu0 0.0
        %868 = vmatprep.subr.mxu0 0.0
        %869 = vmatpush1.msra.mxu0 0.0
        %870 = vmatprep.subr.mxu0 0.0
        %871 = vmatpush1.msra.mxu0 0.0
        %872 = vmatprep.subr.mxu0 0.0
        %873 = vmatpush1.msra.mxu0 0.0
        %874 = vmatprep.subr.mxu0 0.0
        %875 = vmatpush1.msra.mxu0 0.0
        %876 = vmatprep.subr.mxu0 0.0
        %877 = vmatpush1.msra.mxu0 0.0
        %878 = vmatprep.subr.mxu0 0.0
        %879 = vmatpush1.msra.mxu0 0.0
        %880 = vmatprep.subr.mxu0 0.0
        %881 = vmatpush1.msra.mxu0 0.0
        %882 = vmatprep.subr.mxu0 0.0
        %883 = vmatpush1.msra.mxu0 0.0
        %884 = vmatprep.subr.mxu0 0.0
        %885 = vmatpush1.msra.mxu0 0.0
        %886 = vmatprep.subr.mxu0 0.0
        %887 = vmatpush1.msra.mxu0 0.0
        %888 = vmatprep.subr.mxu0 0.0
        %889 = vmatpush1.msra.mxu0 %v853
        %890 = vmatprep.subr.mxu0 0.0
        %891 = vmatpush1.msra.mxu0 %v852
        %892 = vmatprep.subr.mxu0 0.0
        %893 = vmatpush1.msra.mxu0 %v851
        %894 = vmatprep.subr.mxu0 0.0
        %895 = vmatpush1.msra.mxu0 %v850
        %896 = vmatprep.subr.mxu0 0.0
        %897 = vmatpush2.msra.mxu0 0.0
        %898 = vmatprep.subr.mxu0 0.0
        %899 = vmatpush2.msra.mxu0 0.0
        %900 = vmatprep.subr.mxu0 0.0
        %901 = vmatpush2.msra.mxu0 0.0
        %902 = vmatprep.subr.mxu0 0.0
        %903 = vmatpush2.msra.mxu0 0.0
        %904 = vmatprep.subr.mxu0 0.0
        %905 = vmatpush2.msra.mxu0 0.0
        %906 = vmatprep.subr.mxu0 0.0
        %907 = vmatpush2.msra.mxu0 0.0
        %908 = vmatprep.subr.mxu0 0.0
        %909 = vmatpush2.msra.mxu0 0.0
        %910 = vmatprep.subr.mxu0 0.0
        %911 = vmatpush2.msra.mxu0 0.0
        %912 = vmatprep.subr.mxu0 0.0
        %913 = vmatpush2.msra.mxu0 0.0
        %914 = vmatprep.subr.mxu0 0.0
        %915 = vmatpush2.msra.mxu0 0.0
        %916 = vmatprep.subr.mxu0 0.0
        %917 = vmatpush2.msra.mxu0 0.0
        %918 = vmatprep.subr.mxu0 0.0
        %919 = vmatpush2.msra.mxu0 0.0
        %920 = vmatprep.subr.mxu0 0.0
        %921 = vmatpush2.msra.mxu0 0.0
        %922 = vmatprep.subr.mxu0 0.0
        %923 = vmatpush2.msra.mxu0 0.0
        %924 = vmatprep.subr.mxu0 0.0
        %925 = vmatpush2.msra.mxu0 0.0
        %926 = vmatprep.subr.mxu0 0.0
        %927 = vmatpush2.msra.mxu0 0.0
        %928 = vmatprep.mubr.f32.mxu0 0.0
        %929 = vmatmul.mubr.f32.gmra.mxu0 %v862
        %v930 = vpop.f32.mrf.mxu0
        %v931 = vadd.f32 %v859, %v930
        %v932 = vpop.f32.mrf.mxu0
        %933 = vdwg.mxu0
        %v934 = vmul.f32 %v763, 0.35355338
        %vm935 = vcmask 64512
        %v937 = vsel %vm935, %v934, 0
        %v940 = vsel %vm935, %v847, 0
        %942 = vmatprep.subr.mxu0 0.0
        %943 = vmatpush1.xpose.msra.mxu0 0.0
        %944 = vmatprep.subr.mxu0 0.0
        %945 = vmatpush1.xpose.msra.mxu0 0.0
        %946 = vmatprep.subr.mxu0 0.0
        %947 = vmatpush1.xpose.msra.mxu0 0.0
        %948 = vmatprep.subr.mxu0 0.0
        %949 = vmatpush1.xpose.msra.mxu0 0.0
        %950 = vmatprep.subr.mxu0 0.0
        %951 = vmatpush1.xpose.msra.mxu0 0.0
        %952 = vmatprep.subr.mxu0 0.0
        %953 = vmatpush1.xpose.msra.mxu0 0.0
        %954 = vmatprep.subr.mxu0 0.0
        %955 = vmatpush1.xpose.msra.mxu0 0.0
        %956 = vmatprep.subr.mxu0 0.0
        %957 = vmatpush1.xpose.msra.mxu0 0.0
        %958 = vmatprep.subr.mxu0 0.0
        %959 = vmatpush1.xpose.msra.mxu0 0.0
        %960 = vmatprep.subr.mxu0 0.0
        %961 = vmatpush1.xpose.msra.mxu0 0.0
        %962 = vmatprep.subr.mxu0 0.0
        %963 = vmatpush1.xpose.msra.mxu0 0.0
        %964 = vmatprep.subr.mxu0 0.0
        %965 = vmatpush1.xpose.msra.mxu0 0.0
        %966 = vmatprep.subr.mxu0 0.0
        %967 = vmatpush1.xpose.msra.mxu0 0.0
        %968 = vmatprep.subr.mxu0 0.0
        %969 = vmatpush1.xpose.msra.mxu0 0.0
        %970 = vmatprep.subr.mxu0 0.0
        %971 = vmatpush1.xpose.msra.mxu0 0.0
        %972 = vmatprep.subr.mxu0 0.0
        %973 = vmatpush1.xpose.msra.mxu0 %v940
        %974 = vmatprep.subr.mxu0 0.0
        %975 = vmatpush2.xpose.msra.mxu0 0.0
        %976 = vmatprep.subr.mxu0 0.0
        %977 = vmatpush2.xpose.msra.mxu0 0.0
        %978 = vmatprep.subr.mxu0 0.0
        %979 = vmatpush2.xpose.msra.mxu0 0.0
        %980 = vmatprep.subr.mxu0 0.0
        %981 = vmatpush2.xpose.msra.mxu0 0.0
        %982 = vmatprep.subr.mxu0 0.0
        %983 = vmatpush2.xpose.msra.mxu0 0.0
        %984 = vmatprep.subr.mxu0 0.0
        %985 = vmatpush2.xpose.msra.mxu0 0.0
        %986 = vmatprep.subr.mxu0 0.0
        %987 = vmatpush2.xpose.msra.mxu0 0.0
        %988 = vmatprep.subr.mxu0 0.0
        %989 = vmatpush2.xpose.msra.mxu0 0.0
        %990 = vmatprep.subr.mxu0 0.0
        %991 = vmatpush2.xpose.msra.mxu0 0.0
        %992 = vmatprep.subr.mxu0 0.0
        %993 = vmatpush2.xpose.msra.mxu0 0.0
        %994 = vmatprep.subr.mxu0 0.0
        %995 = vmatpush2.xpose.msra.mxu0 0.0
        %996 = vmatprep.subr.mxu0 0.0
        %997 = vmatpush2.xpose.msra.mxu0 0.0
        %998 = vmatprep.subr.mxu0 0.0
        %999 = vmatpush2.xpose.msra.mxu0 0.0
        %1000 = vmatprep.subr.mxu0 0.0
        %1001 = vmatpush2.xpose.msra.mxu0 0.0
        %1002 = vmatprep.subr.mxu0 0.0
        %1003 = vmatpush2.xpose.msra.mxu0 0.0
        %1004 = vmatprep.subr.mxu0 0.0
        %1005 = vmatpush2.xpose.msra.mxu0 0.0
        %1006 = vmatprep.mubr.f32.mxu0 0.0
        %1007 = vmatmul.mubr.f32.gmra.mxu0 %v937
        %v1008 = vpop.f32.mrf.mxu0
        %v1009 = vadd.f32 0.0, %v1008
        %v1010 = vpop.f32.mrf.mxu0
        %1011 = vdwg.mxu0
        %v1012 = vsel %vm935, %v1009, -inf
        %1013 = vmax.xlane.f32.xlu0 %v1012
        %v1014 = vpop.xlane.xlu0 %1013
        %v1015 = vsub.f32 %v1009, %v1014
        %v1016 = vmul.f32 %v1015, 1.442695
        %v1017 = vpow.pop %v1016
        %v1018 = vsel %vm935, %v1017, 0.0
        %1019 = vadd.xlane.f32.xlu0 %v1018
        %v1020 = vpop.xlane.xlu0 %1019
        %v1021 = vrcp.pop %v1020
        %v1022 = vmul.f32 %v1017, %v1021
        %1023 = vst.msk [vmem:[%s661] sm:$0xff] %vm935, %v1022
        %v1025 = vsel %vm935, %v1022, 0
        %1027 = vmatprep.subr.mxu0 0.0
        %1028 = vmatpush1.msra.mxu0 0.0
        %1029 = vmatprep.subr.mxu0 0.0
        %1030 = vmatpush1.msra.mxu0 0.0
        %1031 = vmatprep.subr.mxu0 0.0
        %1032 = vmatpush1.msra.mxu0 0.0
        %1033 = vmatprep.subr.mxu0 0.0
        %1034 = vmatpush1.msra.mxu0 0.0
        %1035 = vmatprep.subr.mxu0 0.0
        %1036 = vmatpush1.msra.mxu0 0.0
        %1037 = vmatprep.subr.mxu0 0.0
        %1038 = vmatpush1.msra.mxu0 0.0
        %1039 = vmatprep.subr.mxu0 0.0
        %1040 = vmatpush1.msra.mxu0 0.0
        %1041 = vmatprep.subr.mxu0 0.0
        %1042 = vmatpush1.msra.mxu0 0.0
        %1043 = vmatprep.subr.mxu0 0.0
        %1044 = vmatpush1.msra.mxu0 0.0
        %1045 = vmatprep.subr.mxu0 0.0
        %1046 = vmatpush1.msra.mxu0 0.0
        %1047 = vmatprep.subr.mxu0 0.0
        %1048 = vmatpush1.msra.mxu0 0.0
        %1049 = vmatprep.subr.mxu0 0.0
        %1050 = vmatpush1.msra.mxu0 0.0
        %1051 = vmatprep.subr.mxu0 0.0
        %1052 = vmatpush1.msra.mxu0 0.0
        %1053 = vmatprep.subr.mxu0 0.0
        %1054 = vmatpush1.msra.mxu0 0.0
        %1055 = vmatprep.subr.mxu0 0.0
        %1056 = vmatpush1.msra.mxu0 0.0
        %1057 = vmatprep.subr.mxu0 0.0
        %1058 = vmatpush1.msra.mxu0 %v931
        %1059 = vmatprep.subr.mxu0 0.0
        %1060 = vmatpush2.msra.mxu0 0.0
        %1061 = vmatprep.subr.mxu0 0.0
        %1062 = vmatpush2.msra.mxu0 0.0
        %1063 = vmatprep.subr.mxu0 0.0
        %1064 = vmatpush2.msra.mxu0 0.0
        %1065 = vmatprep.subr.mxu0 0.0
        %1066 = vmatpush2.msra.mxu0 0.0
        %1067 = vmatprep.subr.mxu0 0.0
        %1068 = vmatpush2.msra.mxu0 0.0
        %1069 = vmatprep.subr.mxu0 0.0
        %1070 = vmatpush2.msra.mxu0 0.0
        %1071 = vmatprep.subr.mxu0 0.0
        %1072 = vmatpush2.msra.mxu0 0.0
        %1073 = vmatprep.subr.mxu0 0.0
        %1074 = vmatpush2.msra.mxu0 0.0
        %1075 = vmatprep.subr.mxu0 0.0
        %1076 = vmatpush2.msra.mxu0 0.0
        %1077 = vmatprep.subr.mxu0 0.0
        %1078 = vmatpush2.msra.mxu0 0.0
        %1079 = vmatprep.subr.mxu0 0.0
        %1080 = vmatpush2.msra.mxu0 0.0
        %1081 = vmatprep.subr.mxu0 0.0
        %1082 = vmatpush2.msra.mxu0 0.0
        %1083 = vmatprep.subr.mxu0 0.0
        %1084 = vmatpush2.msra.mxu0 0.0
        %1085 = vmatprep.subr.mxu0 0.0
        %1086 = vmatpush2.msra.mxu0 0.0
        %1087 = vmatprep.subr.mxu0 0.0
        %1088 = vmatpush2.msra.mxu0 0.0
        %1089 = vmatprep.subr.mxu0 0.0
        %1090 = vmatpush2.msra.mxu0 0.0
        %1091 = vmatprep.mubr.f32.mxu0 0.0
        %1092 = vmatmul.mubr.f32.gmra.mxu0 %v1025
        %v1093 = vpop.f32.mrf.mxu0
        %v1094 = vadd.f32 0.0, %v1093
        %v1095 = vpop.f32.mrf.mxu0
        %1096 = vdwg.mxu0
        %1097 = vst.msk [vmem:[#allocation3] sm:$0xff] %vm935, %v1094
        %1098 = vrot.lane.b32.xlu0 %v934, 120
        %v1099 = vpop.permute.xlu0 %1098
        %1100 = vrot.lane.b32.xlu0 %v847, 120
        %v1101 = vpop.permute.xlu0 %1100
        %v1102 = vsel %vm935, %v1099, 0
        %v1104 = vsel %vm935, %v1101, 0
        %1106 = vmatprep.subr.mxu0 0.0
        %1107 = vmatpush1.xpose.msra.mxu0 0.0
        %1108 = vmatprep.subr.mxu0 0.0
        %1109 = vmatpush1.xpose.msra.mxu0 0.0
        %1110 = vmatprep.subr.mxu0 0.0
        %1111 = vmatpush1.xpose.msra.mxu0 0.0
        %1112 = vmatprep.subr.mxu0 0.0
        %1113 = vmatpush1.xpose.msra.mxu0 0.0
        %1114 = vmatprep.subr.mxu0 0.0
        %1115 = vmatpush1.xpose.msra.mxu0 0.0
        %1116 = vmatprep.subr.mxu0 0.0
        %1117 = vmatpush1.xpose.msra.mxu0 0.0
        %1118 = vmatprep.subr.mxu0 0.0
        %1119 = vmatpush1.xpose.msra.mxu0 0.0
        %1120 = vmatprep.subr.mxu0 0.0
        %1121 = vmatpush1.xpose.msra.mxu0 0.0
        %1122 = vmatprep.subr.mxu0 0.0
        %1123 = vmatpush1.xpose.msra.mxu0 0.0
        %1124 = vmatprep.subr.mxu0 0.0
        %1125 = vmatpush1.xpose.msra.mxu0 0.0
        %1126 = vmatprep.subr.mxu0 0.0
        %1127 = vmatpush1.xpose.msra.mxu0 0.0
        %1128 = vmatprep.subr.mxu0 0.0
        %1129 = vmatpush1.xpose.msra.mxu0 0.0
        %1130 = vmatprep.subr.mxu0 0.0
        %1131 = vmatpush1.xpose.msra.mxu0 0.0
        %1132 = vmatprep.subr.mxu0 0.0
        %1133 = vmatpush1.xpose.msra.mxu0 0.0
        %1134 = vmatprep.subr.mxu0 0.0
        %1135 = vmatpush1.xpose.msra.mxu0 0.0
        %1136 = vmatprep.subr.mxu0 0.0
        %1137 = vmatpush1.xpose.msra.mxu0 %v1104
        %1138 = vmatprep.subr.mxu0 0.0
        %1139 = vmatpush2.xpose.msra.mxu0 0.0
        %1140 = vmatprep.subr.mxu0 0.0
        %1141 = vmatpush2.xpose.msra.mxu0 0.0
        %1142 = vmatprep.subr.mxu0 0.0
        %1143 = vmatpush2.xpose.msra.mxu0 0.0
        %1144 = vmatprep.subr.mxu0 0.0
        %1145 = vmatpush2.xpose.msra.mxu0 0.0
        %1146 = vmatprep.subr.mxu0 0.0
        %1147 = vmatpush2.xpose.msra.mxu0 0.0
        %1148 = vmatprep.subr.mxu0 0.0
        %1149 = vmatpush2.xpose.msra.mxu0 0.0
        %1150 = vmatprep.subr.mxu0 0.0
        %1151 = vmatpush2.xpose.msra.mxu0 0.0
        %1152 = vmatprep.subr.mxu0 0.0
        %1153 = vmatpush2.xpose.msra.mxu0 0.0
        %1154 = vmatprep.subr.mxu0 0.0
        %1155 = vmatpush2.xpose.msra.mxu0 0.0
        %1156 = vmatprep.subr.mxu0 0.0
        %1157 = vmatpush2.xpose.msra.mxu0 0.0
        %1158 = vmatprep.subr.mxu0 0.0
        %1159 = vmatpush2.xpose.msra.mxu0 0.0
        %1160 = vmatprep.subr.mxu0 0.0
        %1161 = vmatpush2.xpose.msra.mxu0 0.0
        %1162 = vmatprep.subr.mxu0 0.0
        %1163 = vmatpush2.xpose.msra.mxu0 0.0
        %1164 = vmatprep.subr.mxu0 0.0
        %1165 = vmatpush2.xpose.msra.mxu0 0.0
        %1166 = vmatprep.subr.mxu0 0.0
        %1167 = vmatpush2.xpose.msra.mxu0 0.0
        %1168 = vmatprep.subr.mxu0 0.0
        %1169 = vmatpush2.xpose.msra.mxu0 0.0
        %1170 = vmatprep.mubr.f32.mxu0 0.0
        %1171 = vmatmul.mubr.f32.gmra.mxu0 %v1102
        %v1172 = vpop.f32.mrf.mxu0
        %v1173 = vadd.f32 0.0, %v1172
        %v1174 = vpop.f32.mrf.mxu0
        %1175 = vdwg.mxu0
        %v1176 = vsel %vm935, %v1173, -inf
        %1177 = vmax.xlane.f32.xlu0 %v1176
        %v1178 = vpop.xlane.xlu0 %1177
        %v1179 = vsub.f32 %v1173, %v1178
        %v1180 = vmul.f32 %v1179, 1.442695
        %v1181 = vpow.pop %v1180
        %v1182 = vsel %vm935, %v1181, 0.0
        %1183 = vadd.xlane.f32.xlu0 %v1182
        %v1184 = vpop.xlane.xlu0 %1183
        %v1185 = vrcp.pop %v1184
        %v1186 = vmul.f32 %v1181, %v1185
        %s1187 = scalar_lea.vmem %s661, 8 [#allocation17]
        %1188 = vst.msk [vmem:[%s1187] sm:$0xff] %vm935, %v1186
        %1190 = vrot.lane.b32.xlu0 %v931, 120
        %v1191 = vpop.permute.xlu0 %1190
        %v1194 = vsel %vm935, %v1186, 0
        %1196 = vmatprep.subr.mxu0 0.0
        %1197 = vmatpush1.msra.mxu0 0.0
        %1198 = vmatprep.subr.mxu0 0.0
        %1199 = vmatpush1.msra.mxu0 0.0
        %1200 = vmatprep.subr.mxu0 0.0
        %1201 = vmatpush1.msra.mxu0 0.0
        %1202 = vmatprep.subr.mxu0 0.0
        %1203 = vmatpush1.msra.mxu0 0.0
        %1204 = vmatprep.subr.mxu0 0.0
        %1205 = vmatpush1.msra.mxu0 0.0
        %1206 = vmatprep.subr.mxu0 0.0
        %1207 = vmatpush1.msra.mxu0 0.0
        %1208 = vmatprep.subr.mxu0 0.0
        %1209 = vmatpush1.msra.mxu0 0.0
        %1210 = vmatprep.subr.mxu0 0.0
        %1211 = vmatpush1.msra.mxu0 0.0
        %1212 = vmatprep.subr.mxu0 0.0
        %1213 = vmatpush1.msra.mxu0 0.0
        %1214 = vmatprep.subr.mxu0 0.0
        %1215 = vmatpush1.msra.mxu0 0.0
        %1216 = vmatprep.subr.mxu0 0.0
        %1217 = vmatpush1.msra.mxu0 0.0
        %1218 = vmatprep.subr.mxu0 0.0
        %1219 = vmatpush1.msra.mxu0 0.0
        %1220 = vmatprep.subr.mxu0 0.0
        %1221 = vmatpush1.msra.mxu0 0.0
        %1222 = vmatprep.subr.mxu0 0.0
        %1223 = vmatpush1.msra.mxu0 0.0
        %1224 = vmatprep.subr.mxu0 0.0
        %1225 = vmatpush1.msra.mxu0 0.0
        %1226 = vmatprep.subr.mxu0 0.0
        %1227 = vmatpush1.msra.mxu0 %v1191
        %1228 = vmatprep.subr.mxu0 0.0
        %1229 = vmatpush2.msra.mxu0 0.0
        %1230 = vmatprep.subr.mxu0 0.0
        %1231 = vmatpush2.msra.mxu0 0.0
        %1232 = vmatprep.subr.mxu0 0.0
        %1233 = vmatpush2.msra.mxu0 0.0
        %1234 = vmatprep.subr.mxu0 0.0
        %1235 = vmatpush2.msra.mxu0 0.0
        %1236 = vmatprep.subr.mxu0 0.0
        %1237 = vmatpush2.msra.mxu0 0.0
        %1238 = vmatprep.subr.mxu0 0.0
        %1239 = vmatpush2.msra.mxu0 0.0
        %1240 = vmatprep.subr.mxu0 0.0
        %1241 = vmatpush2.msra.mxu0 0.0
        %1242 = vmatprep.subr.mxu0 0.0
        %1243 = vmatpush2.msra.mxu0 0.0
        %1244 = vmatprep.subr.mxu0 0.0
        %1245 = vmatpush2.msra.mxu0 0.0
        %1246 = vmatprep.subr.mxu0 0.0
        %1247 = vmatpush2.msra.mxu0 0.0
        %1248 = vmatprep.subr.mxu0 0.0
        %1249 = vmatpush2.msra.mxu0 0.0
        %1250 = vmatprep.subr.mxu0 0.0
        %1251 = vmatpush2.msra.mxu0 0.0
        %1252 = vmatprep.subr.mxu0 0.0
        %1253 = vmatpush2.msra.mxu0 0.0
        %1254 = vmatprep.subr.mxu0 0.0
        %1255 = vmatpush2.msra.mxu0 0.0
        %1256 = vmatprep.subr.mxu0 0.0
        %1257 = vmatpush2.msra.mxu0 0.0
        %1258 = vmatprep.subr.mxu0 0.0
        %1259 = vmatpush2.msra.mxu0 0.0
        %1260 = vmatprep.mubr.f32.mxu0 0.0
        %1261 = vmatmul.mubr.f32.gmra.mxu0 %v1194
        %v1262 = vpop.f32.mrf.mxu0
        %v1263 = vadd.f32 0.0, %v1262
        %v1264 = vpop.f32.mrf.mxu0
        %1265 = vdwg.mxu0
        %1267 = vrot.lane.b32.xlu0 %v1263, 8
        %v1268 = vpop.permute.xlu0 %1267
        %vm1270 = vcmask 130112
        %1271 = vst.msk [vmem:[#allocation3] sm:$0xff] %vm1270, %v1268
        %1272 = vrot.lane.b32.xlu0 %v934, 112
        %v1273 = vpop.permute.xlu0 %1272
        %1274 = vrot.lane.b32.xlu0 %v847, 112
        %v1275 = vpop.permute.xlu0 %1274
        %v1276 = vsel %vm935, %v1273, 0
        %v1278 = vsel %vm935, %v1275, 0
        %1280 = vmatprep.subr.mxu0 0.0
        %1281 = vmatpush1.xpose.msra.mxu0 0.0
        %1282 = vmatprep.subr.mxu0 0.0
        %1283 = vmatpush1.xpose.msra.mxu0 0.0
        %1284 = vmatprep.subr.mxu0 0.0
        %1285 = vmatpush1.xpose.msra.mxu0 0.0
        %1286 = vmatprep.subr.mxu0 0.0
        %1287 = vmatpush1.xpose.msra.mxu0 0.0
        %1288 = vmatprep.subr.mxu0 0.0
        %1289 = vmatpush1.xpose.msra.mxu0 0.0
        %1290 = vmatprep.subr.mxu0 0.0
        %1291 = vmatpush1.xpose.msra.mxu0 0.0
        %1292 = vmatprep.subr.mxu0 0.0
        %1293 = vmatpush1.xpose.msra.mxu0 0.0
        %1294 = vmatprep.subr.mxu0 0.0
        %1295 = vmatpush1.xpose.msra.mxu0 0.0
        %1296 = vmatprep.subr.mxu0 0.0
        %1297 = vmatpush1.xpose.msra.mxu0 0.0
        %1298 = vmatprep.subr.mxu0 0.0
        %1299 = vmatpush1.xpose.msra.mxu0 0.0
        %1300 = vmatprep.subr.mxu0 0.0
        %1301 = vmatpush1.xpose.msra.mxu0 0.0
        %1302 = vmatprep.subr.mxu0 0.0
        %1303 = vmatpush1.xpose.msra.mxu0 0.0
        %1304 = vmatprep.subr.mxu0 0.0
        %1305 = vmatpush1.xpose.msra.mxu0 0.0
        %1306 = vmatprep.subr.mxu0 0.0
        %1307 = vmatpush1.xpose.msra.mxu0 0.0
        %1308 = vmatprep.subr.mxu0 0.0
        %1309 = vmatpush1.xpose.msra.mxu0 0.0
        %1310 = vmatprep.subr.mxu0 0.0
        %1311 = vmatpush1.xpose.msra.mxu0 %v1278
        %1312 = vmatprep.subr.mxu0 0.0
        %1313 = vmatpush2.xpose.msra.mxu0 0.0
        %1314 = vmatprep.subr.mxu0 0.0
        %1315 = vmatpush2.xpose.msra.mxu0 0.0
        %1316 = vmatprep.subr.mxu0 0.0
        %1317 = vmatpush2.xpose.msra.mxu0 0.0
        %1318 = vmatprep.subr.mxu0 0.0
        %1319 = vmatpush2.xpose.msra.mxu0 0.0
        %1320 = vmatprep.subr.mxu0 0.0
        %1321 = vmatpush2.xpose.msra.mxu0 0.0
        %1322 = vmatprep.subr.mxu0 0.0
        %1323 = vmatpush2.xpose.msra.mxu0 0.0
        %1324 = vmatprep.subr.mxu0 0.0
        %1325 = vmatpush2.xpose.msra.mxu0 0.0
        %1326 = vmatprep.subr.mxu0 0.0
        %1327 = vmatpush2.xpose.msra.mxu0 0.0
        %1328 = vmatprep.subr.mxu0 0.0
        %1329 = vmatpush2.xpose.msra.mxu0 0.0
        %1330 = vmatprep.subr.mxu0 0.0
        %1331 = vmatpush2.xpose.msra.mxu0 0.0
        %1332 = vmatprep.subr.mxu0 0.0
        %1333 = vmatpush2.xpose.msra.mxu0 0.0
        %1334 = vmatprep.subr.mxu0 0.0
        %1335 = vmatpush2.xpose.msra.mxu0 0.0
        %1336 = vmatprep.subr.mxu0 0.0
        %1337 = vmatpush2.xpose.msra.mxu0 0.0
        %1338 = vmatprep.subr.mxu0 0.0
        %1339 = vmatpush2.xpose.msra.mxu0 0.0
        %1340 = vmatprep.subr.mxu0 0.0
        %1341 = vmatpush2.xpose.msra.mxu0 0.0
        %1342 = vmatprep.subr.mxu0 0.0
        %1343 = vmatpush2.xpose.msra.mxu0 0.0
        %1344 = vmatprep.mubr.f32.mxu0 0.0
        %1345 = vmatmul.mubr.f32.gmra.mxu0 %v1276
        %v1346 = vpop.f32.mrf.mxu0
        %v1347 = vadd.f32 0.0, %v1346
        %v1348 = vpop.f32.mrf.mxu0
        %1349 = vdwg.mxu0
        %v1350 = vsel %vm935, %v1347, -inf
        %1351 = vmax.xlane.f32.xlu0 %v1350
        %v1352 = vpop.xlane.xlu0 %1351
        %v1353 = vsub.f32 %v1347, %v1352
        %v1354 = vmul.f32 %v1353, 1.442695
        %v1355 = vpow.pop %v1354
        %v1356 = vsel %vm935, %v1355, 0.0
        %1357 = vadd.xlane.f32.xlu0 %v1356
        %v1358 = vpop.xlane.xlu0 %1357
        %v1359 = vrcp.pop %v1358
        %v1360 = vmul.f32 %v1355, %v1359
        %s1361 = scalar_lea.vmem %s661, 16 [#allocation17]
        %1362 = vst.msk [vmem:[%s1361] sm:$0xff] %vm935, %v1360
        %1363 = vrot.lane.b32.xlu0 %v931, 112
        %v1364 = vpop.permute.xlu0 %1363
        %v1367 = vsel %vm935, %v1360, 0
        %1369 = vmatprep.subr.mxu0 0.0
        %1370 = vmatpush1.msra.mxu0 0.0
        %1371 = vmatprep.subr.mxu0 0.0
        %1372 = vmatpush1.msra.mxu0 0.0
        %1373 = vmatprep.subr.mxu0 0.0
        %1374 = vmatpush1.msra.mxu0 0.0
        %1375 = vmatprep.subr.mxu0 0.0
        %1376 = vmatpush1.msra.mxu0 0.0
        %1377 = vmatprep.subr.mxu0 0.0
        %1378 = vmatpush1.msra.mxu0 0.0
        %1379 = vmatprep.subr.mxu0 0.0
        %1380 = vmatpush1.msra.mxu0 0.0
        %1381 = vmatprep.subr.mxu0 0.0
        %1382 = vmatpush1.msra.mxu0 0.0
        %1383 = vmatprep.subr.mxu0 0.0
        %1384 = vmatpush1.msra.mxu0 0.0
        %1385 = vmatprep.subr.mxu0 0.0
        %1386 = vmatpush1.msra.mxu0 0.0
        %1387 = vmatprep.subr.mxu0 0.0
        %1388 = vmatpush1.msra.mxu0 0.0
        %1389 = vmatprep.subr.mxu0 0.0
        %1390 = vmatpush1.msra.mxu0 0.0
        %1391 = vmatprep.subr.mxu0 0.0
        %1392 = vmatpush1.msra.mxu0 0.0
        %1393 = vmatprep.subr.mxu0 0.0
        %1394 = vmatpush1.msra.mxu0 0.0
        %1395 = vmatprep.subr.mxu0 0.0
        %1396 = vmatpush1.msra.mxu0 0.0
        %1397 = vmatprep.subr.mxu0 0.0
        %1398 = vmatpush1.msra.mxu0 0.0
        %1399 = vmatprep.subr.mxu0 0.0
        %1400 = vmatpush1.msra.mxu0 %v1364
        %1401 = vmatprep.subr.mxu0 0.0
        %1402 = vmatpush2.msra.mxu0 0.0
        %1403 = vmatprep.subr.mxu0 0.0
        %1404 = vmatpush2.msra.mxu0 0.0
        %1405 = vmatprep.subr.mxu0 0.0
        %1406 = vmatpush2.msra.mxu0 0.0
        %1407 = vmatprep.subr.mxu0 0.0
        %1408 = vmatpush2.msra.mxu0 0.0
        %1409 = vmatprep.subr.mxu0 0.0
        %1410 = vmatpush2.msra.mxu0 0.0
        %1411 = vmatprep.subr.mxu0 0.0
        %1412 = vmatpush2.msra.mxu0 0.0
        %1413 = vmatprep.subr.mxu0 0.0
        %1414 = vmatpush2.msra.mxu0 0.0
        %1415 = vmatprep.subr.mxu0 0.0
        %1416 = vmatpush2.msra.mxu0 0.0
        %1417 = vmatprep.subr.mxu0 0.0
        %1418 = vmatpush2.msra.mxu0 0.0
        %1419 = vmatprep.subr.mxu0 0.0
        %1420 = vmatpush2.msra.mxu0 0.0
        %1421 = vmatprep.subr.mxu0 0.0
        %1422 = vmatpush2.msra.mxu0 0.0
        %1423 = vmatprep.subr.mxu0 0.0
        %1424 = vmatpush2.msra.mxu0 0.0
        %1425 = vmatprep.subr.mxu0 0.0
        %1426 = vmatpush2.msra.mxu0 0.0
        %1427 = vmatprep.subr.mxu0 0.0
        %1428 = vmatpush2.msra.mxu0 0.0
        %1429 = vmatprep.subr.mxu0 0.0
        %1430 = vmatpush2.msra.mxu0 0.0
        %1431 = vmatprep.subr.mxu0 0.0
        %1432 = vmatpush2.msra.mxu0 0.0
        %1433 = vmatprep.mubr.f32.mxu0 0.0
        %1434 = vmatmul.mubr.f32.gmra.mxu0 %v1367
        %v1435 = vpop.f32.mrf.mxu0
        %v1436 = vadd.f32 0.0, %v1435
        %v1437 = vpop.f32.mrf.mxu0
        %1438 = vdwg.mxu0
        %1440 = vrot.lane.b32.xlu0 %v1436, 16
        %v1441 = vpop.permute.xlu0 %1440
        %vm1443 = vcmask 195712
        %1444 = vst.msk [vmem:[#allocation3] sm:$0xff] %vm1443, %v1441
        %1445 = vrot.lane.b32.xlu0 %v934, 104
        %v1446 = vpop.permute.xlu0 %1445
        %1447 = vrot.lane.b32.xlu0 %v847, 104
        %v1448 = vpop.permute.xlu0 %1447
        %v1449 = vsel %vm935, %v1446, 0
        %v1451 = vsel %vm935, %v1448, 0
        %1453 = vmatprep.subr.mxu0 0.0
        %1454 = vmatpush1.xpose.msra.mxu0 0.0
        %1455 = vmatprep.subr.mxu0 0.0
        %1456 = vmatpush1.xpose.msra.mxu0 0.0
        %1457 = vmatprep.subr.mxu0 0.0
        %1458 = vmatpush1.xpose.msra.mxu0 0.0
        %1459 = vmatprep.subr.mxu0 0.0
        %1460 = vmatpush1.xpose.msra.mxu0 0.0
        %1461 = vmatprep.subr.mxu0 0.0
        %1462 = vmatpush1.xpose.msra.mxu0 0.0
        %1463 = vmatprep.subr.mxu0 0.0
        %1464 = vmatpush1.xpose.msra.mxu0 0.0
        %1465 = vmatprep.subr.mxu0 0.0
        %1466 = vmatpush1.xpose.msra.mxu0 0.0
        %1467 = vmatprep.subr.mxu0 0.0
        %1468 = vmatpush1.xpose.msra.mxu0 0.0
        %1469 = vmatprep.subr.mxu0 0.0
        %1470 = vmatpush1.xpose.msra.mxu0 0.0
        %1471 = vmatprep.subr.mxu0 0.0
        %1472 = vmatpush1.xpose.msra.mxu0 0.0
        %1473 = vmatprep.subr.mxu0 0.0
        %1474 = vmatpush1.xpose.msra.mxu0 0.0
        %1475 = vmatprep.subr.mxu0 0.0
        %1476 = vmatpush1.xpose.msra.mxu0 0.0
        %1477 = vmatprep.subr.mxu0 0.0
        %1478 = vmatpush1.xpose.msra.mxu0 0.0
        %1479 = vmatprep.subr.mxu0 0.0
        %1480 = vmatpush1.xpose.msra.mxu0 0.0
        %1481 = vmatprep.subr.mxu0 0.0
        %1482 = vmatpush1.xpose.msra.mxu0 0.0
        %1483 = vmatprep.subr.mxu0 0.0
        %1484 = vmatpush1.xpose.msra.mxu0 %v1451
        %1485 = vmatprep.subr.mxu0 0.0
        %1486 = vmatpush2.xpose.msra.mxu0 0.0
        %1487 = vmatprep.subr.mxu0 0.0
        %1488 = vmatpush2.xpose.msra.mxu0 0.0
        %1489 = vmatprep.subr.mxu0 0.0
        %1490 = vmatpush2.xpose.msra.mxu0 0.0
        %1491 = vmatprep.subr.mxu0 0.0
        %1492 = vmatpush2.xpose.msra.mxu0 0.0
        %1493 = vmatprep.subr.mxu0 0.0
        %1494 = vmatpush2.xpose.msra.mxu0 0.0
        %1495 = vmatprep.subr.mxu0 0.0
        %1496 = vmatpush2.xpose.msra.mxu0 0.0
        %1497 = vmatprep.subr.mxu0 0.0
        %1498 = vmatpush2.xpose.msra.mxu0 0.0
        %1499 = vmatprep.subr.mxu0 0.0
        %1500 = vmatpush2.xpose.msra.mxu0 0.0
        %1501 = vmatprep.subr.mxu0 0.0
        %1502 = vmatpush2.xpose.msra.mxu0 0.0
        %1503 = vmatprep.subr.mxu0 0.0
        %1504 = vmatpush2.xpose.msra.mxu0 0.0
        %1505 = vmatprep.subr.mxu0 0.0
        %1506 = vmatpush2.xpose.msra.mxu0 0.0
        %1507 = vmatprep.subr.mxu0 0.0
        %1508 = vmatpush2.xpose.msra.mxu0 0.0
        %1509 = vmatprep.subr.mxu0 0.0
        %1510 = vmatpush2.xpose.msra.mxu0 0.0
        %1511 = vmatprep.subr.mxu0 0.0
        %1512 = vmatpush2.xpose.msra.mxu0 0.0
        %1513 = vmatprep.subr.mxu0 0.0
        %1514 = vmatpush2.xpose.msra.mxu0 0.0
        %1515 = vmatprep.subr.mxu0 0.0
        %1516 = vmatpush2.xpose.msra.mxu0 0.0
        %1517 = vmatprep.mubr.f32.mxu0 0.0
        %1518 = vmatmul.mubr.f32.gmra.mxu0 %v1449
        %v1519 = vpop.f32.mrf.mxu0
        %v1520 = vadd.f32 0.0, %v1519
        %v1521 = vpop.f32.mrf.mxu0
        %1522 = vdwg.mxu0
        %v1523 = vsel %vm935, %v1520, -inf
        %1524 = vmax.xlane.f32.xlu0 %v1523
        %v1525 = vpop.xlane.xlu0 %1524
        %v1526 = vsub.f32 %v1520, %v1525
        %v1527 = vmul.f32 %v1526, 1.442695
        %v1528 = vpow.pop %v1527
        %v1529 = vsel %vm935, %v1528, 0.0
        %1530 = vadd.xlane.f32.xlu0 %v1529
        %v1531 = vpop.xlane.xlu0 %1530
        %v1532 = vrcp.pop %v1531
        %v1533 = vmul.f32 %v1528, %v1532
        %s1534 = scalar_lea.vmem %s661, 24 [#allocation17]
        %1535 = vst.msk [vmem:[%s1534] sm:$0xff] %vm935, %v1533
        %1536 = vrot.lane.b32.xlu0 %v931, 104
        %v1537 = vpop.permute.xlu0 %1536
        %v1540 = vsel %vm935, %v1533, 0
        %1542 = vmatprep.subr.mxu0 0.0
        %1543 = vmatpush1.msra.mxu0 0.0
        %1544 = vmatprep.subr.mxu0 0.0
        %1545 = vmatpush1.msra.mxu0 0.0
        %1546 = vmatprep.subr.mxu0 0.0
        %1547 = vmatpush1.msra.mxu0 0.0
        %1548 = vmatprep.subr.mxu0 0.0
        %1549 = vmatpush1.msra.mxu0 0.0
        %1550 = vmatprep.subr.mxu0 0.0
        %1551 = vmatpush1.msra.mxu0 0.0
        %1552 = vmatprep.subr.mxu0 0.0
        %1553 = vmatpush1.msra.mxu0 0.0
        %1554 = vmatprep.subr.mxu0 0.0
        %1555 = vmatpush1.msra.mxu0 0.0
        %1556 = vmatprep.subr.mxu0 0.0
        %1557 = vmatpush1.msra.mxu0 0.0
        %1558 = vmatprep.subr.mxu0 0.0
        %1559 = vmatpush1.msra.mxu0 0.0
        %1560 = vmatprep.subr.mxu0 0.0
        %1561 = vmatpush1.msra.mxu0 0.0
        %1562 = vmatprep.subr.mxu0 0.0
        %1563 = vmatpush1.msra.mxu0 0.0
        %1564 = vmatprep.subr.mxu0 0.0
        %1565 = vmatpush1.msra.mxu0 0.0
        %1566 = vmatprep.subr.mxu0 0.0
        %1567 = vmatpush1.msra.mxu0 0.0
        %1568 = vmatprep.subr.mxu0 0.0
        %1569 = vmatpush1.msra.mxu0 0.0
        %1570 = vmatprep.subr.mxu0 0.0
        %1571 = vmatpush1.msra.mxu0 0.0
        %1572 = vmatprep.subr.mxu0 0.0
        %1573 = vmatpush1.msra.mxu0 %v1537
        %1574 = vmatprep.subr.mxu0 0.0
        %1575 = vmatpush2.msra.mxu0 0.0
        %1576 = vmatprep.subr.mxu0 0.0
        %1577 = vmatpush2.msra.mxu0 0.0
        %1578 = vmatprep.subr.mxu0 0.0
        %1579 = vmatpush2.msra.mxu0 0.0
        %1580 = vmatprep.subr.mxu0 0.0
        %1581 = vmatpush2.msra.mxu0 0.0
        %1582 = vmatprep.subr.mxu0 0.0
        %1583 = vmatpush2.msra.mxu0 0.0
        %1584 = vmatprep.subr.mxu0 0.0
        %1585 = vmatpush2.msra.mxu0 0.0
        %1586 = vmatprep.subr.mxu0 0.0
        %1587 = vmatpush2.msra.mxu0 0.0
        %1588 = vmatprep.subr.mxu0 0.0
        %1589 = vmatpush2.msra.mxu0 0.0
        %1590 = vmatprep.subr.mxu0 0.0
        %1591 = vmatpush2.msra.mxu0 0.0
        %1592 = vmatprep.subr.mxu0 0.0
        %1593 = vmatpush2.msra.mxu0 0.0
        %1594 = vmatprep.subr.mxu0 0.0
        %1595 = vmatpush2.msra.mxu0 0.0
        %1596 = vmatprep.subr.mxu0 0.0
        %1597 = vmatpush2.msra.mxu0 0.0
        %1598 = vmatprep.subr.mxu0 0.0
        %1599 = vmatpush2.msra.mxu0 0.0
        %1600 = vmatprep.subr.mxu0 0.0
        %1601 = vmatpush2.msra.mxu0 0.0
        %1602 = vmatprep.subr.mxu0 0.0
        %1603 = vmatpush2.msra.mxu0 0.0
        %1604 = vmatprep.subr.mxu0 0.0
        %1605 = vmatpush2.msra.mxu0 0.0
        %1606 = vmatprep.mubr.f32.mxu0 0.0
        %1607 = vmatmul.mubr.f32.gmra.mxu0 %v1540
        %v1608 = vpop.f32.mrf.mxu0
        %v1609 = vadd.f32 0.0, %v1608
        %v1610 = vpop.f32.mrf.mxu0
        %1611 = vdwg.mxu0
        %1613 = vrot.lane.b32.xlu0 %v1609, 24
        %v1614 = vpop.permute.xlu0 %1613
        %vm1616 = vcmask 261312
        %1617 = vst.msk [vmem:[#allocation3] sm:$0xff] %vm1616, %v1614
        %v1618 = vld [vmem:[#allocation2] sm:$0xff]
        %v1619 = vld [vmem:[#allocation3] sm:$0xff]
        %v1620 = vld [vmem:[#allocation15] sm:$0xff]
        %v1621 = vld [vmem:[#allocation15 + $0x8] sm:$0xff]
        %v1622 = vld [vmem:[#allocation15 + $0x10] sm:$0xff]
        %v1623 = vld [vmem:[#allocation15 + $0x18] sm:$0xff]
        %v1625 = vsel %vm692, %v1619, 0
        %1627 = vmatprep.subr.mxu0 0.0
        %1628 = vmatpush1.msra.mxu0 0.0
        %1629 = vmatprep.subr.mxu0 0.0
        %1630 = vmatpush1.msra.mxu0 0.0
        %1631 = vmatprep.subr.mxu0 0.0
        %1632 = vmatpush1.msra.mxu0 0.0
        %1633 = vmatprep.subr.mxu0 0.0
        %1634 = vmatpush1.msra.mxu0 0.0
        %1635 = vmatprep.subr.mxu0 0.0
        %1636 = vmatpush1.msra.mxu0 0.0
        %1637 = vmatprep.subr.mxu0 0.0
        %1638 = vmatpush1.msra.mxu0 0.0
        %1639 = vmatprep.subr.mxu0 0.0
        %1640 = vmatpush1.msra.mxu0 0.0
        %1641 = vmatprep.subr.mxu0 0.0
        %1642 = vmatpush1.msra.mxu0 0.0
        %1643 = vmatprep.subr.mxu0 0.0
        %1644 = vmatpush1.msra.mxu0 0.0
        %1645 = vmatprep.subr.mxu0 0.0
        %1646 = vmatpush1.msra.mxu0 0.0
        %1647 = vmatprep.subr.mxu0 0.0
        %1648 = vmatpush1.msra.mxu0 0.0
        %1649 = vmatprep.subr.mxu0 0.0
        %1650 = vmatpush1.msra.mxu0 0.0
        %1651 = vmatprep.subr.mxu0 0.0
        %1652 = vmatpush1.msra.mxu0 %v1623
        %1653 = vmatprep.subr.mxu0 0.0
        %1654 = vmatpush1.msra.mxu0 %v1622
        %1655 = vmatprep.subr.mxu0 0.0
        %1656 = vmatpush1.msra.mxu0 %v1621
        %1657 = vmatprep.subr.mxu0 0.0
        %1658 = vmatpush1.msra.mxu0 %v1620
        %1659 = vmatprep.subr.mxu0 0.0
        %1660 = vmatpush2.msra.mxu0 0.0
        %1661 = vmatprep.subr.mxu0 0.0
        %1662 = vmatpush2.msra.mxu0 0.0
        %1663 = vmatprep.subr.mxu0 0.0
        %1664 = vmatpush2.msra.mxu0 0.0
        %1665 = vmatprep.subr.mxu0 0.0
        %1666 = vmatpush2.msra.mxu0 0.0
        %1667 = vmatprep.subr.mxu0 0.0
        %1668 = vmatpush2.msra.mxu0 0.0
        %1669 = vmatprep.subr.mxu0 0.0
        %1670 = vmatpush2.msra.mxu0 0.0
        %1671 = vmatprep.subr.mxu0 0.0
        %1672 = vmatpush2.msra.mxu0 0.0
        %1673 = vmatprep.subr.mxu0 0.0
        %1674 = vmatpush2.msra.mxu0 0.0
        %1675 = vmatprep.subr.mxu0 0.0
        %1676 = vmatpush2.msra.mxu0 0.0
        %1677 = vmatprep.subr.mxu0 0.0
        %1678 = vmatpush2.msra.mxu0 0.0
        %1679 = vmatprep.subr.mxu0 0.0
        %1680 = vmatpush2.msra.mxu0 0.0
        %1681 = vmatprep.subr.mxu0 0.0
        %1682 = vmatpush2.msra.mxu0 0.0
        %1683 = vmatprep.subr.mxu0 0.0
        %1684 = vmatpush2.msra.mxu0 0.0
        %1685 = vmatprep.subr.mxu0 0.0
        %1686 = vmatpush2.msra.mxu0 0.0
        %1687 = vmatprep.subr.mxu0 0.0
        %1688 = vmatpush2.msra.mxu0 0.0
        %1689 = vmatprep.subr.mxu0 0.0
        %1690 = vmatpush2.msra.mxu0 0.0
        %1691 = vmatprep.mubr.f32.mxu0 0.0
        %1692 = vmatmul.mubr.f32.gmra.mxu0 %v1625
        %v1693 = vpop.f32.mrf.mxu0
        %v1694 = vadd.f32 0.0, %v1693
        %v1695 = vpop.f32.mrf.mxu0
        %1696 = vdwg.mxu0
        %v1697 = vadd.f32 %v1618, %v1694
        %1698 = vst.msk [vmem:[#allocation2] sm:$0xff] %vm692, %v1697
        // Predicated region
        $region97: #{tpu_custom_call.1} parent=63 // pred_check
          %p1699 = pneg %p672
        $region98: #{tpu_custom_call.1} parent=63 // pred_check_branch
          %1701 = sbr.rel (%p1699) target = $region100
        $region99: #{tpu_custom_call.1} parent=63 // pred_region
          %v1702 = vld [vmem:[#allocation2] sm:$0xff]
          %v1703 = vld [vmem:[%s10] sm:$0x1]
          %v1705 = vlaneseq
          %v1706 = vshrl.u32 %v1705, 7
          %v1707 = vsub.s32 0, %v1706
          %v1708 = vrot.slane %v1703, %v1707
          %v1710 = vadd.f32 %v1702, %v1708
          %1711 = vst.msk [vmem:[%s654] sm:$0xff] %vm692, %v1710
        $region100: #{tpu_custom_call.1} parent=63 // pred_fallthru
          _
        %s1712 = sand.u32 %s350, 1
        %s1713 = scalar_lea.sflag [#allocation6], %s1712
        %s1714 = sand.u32 %s350, 1
        %s1715 = smul.addr %s1714, 8
        %s1716 = scalar_lea.vmem [#allocation16], %s1715
        %s1717 = sand.u32 %s380, 1
        %s1718 = scalar_lea.sflag [#allocation18], %s1717
        %s1719 = sand.u32 %s380, 1
        %s1720 = smul.addr %s1719, 32
        %s1721 = scalar_lea.vmem [#allocation17], %s1720
        // Predicated region
        $region101: #{tpu_custom_call.1} parent=63 // pred_check
          %p1722 = pneg %p360
        $region102: #{tpu_custom_call.1} parent=63 // pred_check_branch
          %1724 = sbr.rel (%p1722) target = $region104
        $region103: #{tpu_custom_call.1} parent=63 // pred_region
          %s1726 = ssub.s32 128, 128
          %1727 = vsyncadd %s1713, %s1726
          %s1728 = sadd.s32 %s44, %s43
          %s1729 = smul.addr %s1728, 128
          %s1730 = scalar_lea.hbm %s11, %s1729
          %s1732 = sshll.u32 %s1716, 4
          %s1733 = int_to_ptr.vmem [resolvable:$true] %s1732
          %1735 = dma.vmem_to_hbm [thread:$0]  %s1733, 128, %s1730, %s1713
        $region104: #{tpu_custom_call.1} parent=63 // pred_fallthru
          _
        // Predicated region
        $region105: #{tpu_custom_call.1} parent=63 // pred_check
          %p1736 = pneg %p390
        $region106: #{tpu_custom_call.1} parent=63 // pred_check_branch
          %1738 = sbr.rel (%p1736) target = $region108
        $region107: #{tpu_custom_call.1} parent=63 // pred_region
          %s1739 = smul.u32 4, %s45
          %s1741 = ssub.s32 512, 512
          %1742 = vsyncadd %s1718, %s1741
          %s1743 = sadd.s32 %s44, %s1739
          %s1744 = smul.addr %s43, 4
          %s1745 = sadd.s32 %s1743, %s1744
          %s1746 = smul.addr %s1745, 128
          %s1747 = scalar_lea.hbm %s12, %s1746
          %s1748 = sshll.u32 %s1721, 4
          %s1749 = int_to_ptr.vmem [resolvable:$true] %s1748
          %1754 = dma.vmem_to_hbm [thread:$0]  %s1749, 512, %s1747, %s1718, 128, 128, 8
        $region108: #{tpu_custom_call.1} parent=63 // pred_fallthru
          _
      $region64: #{tpu_custom_call.1} parent=5 // pred_fallthru
        _
      %p1755 = scmp.le.s32.totalorder 2, %s33
      // Predicated region
      $region109: #{tpu_custom_call.1} parent=5 // pred_check
        %p1756 = pneg %p1755
      $region110: #{tpu_custom_call.1} parent=5 // pred_check_branch
        %1758 = sbr.rel (%p1756) target = $region112
      $region111: #{tpu_custom_call.1} parent=5 // pred_region
        %s1759 = ssub.s32 %s33, 2
        // Predicated region
        $region113: #{tpu_custom_call.1} parent=111 // pred_check
          %p1760 = pneg %p366
        $region114: #{tpu_custom_call.1} parent=111 // pred_check_branch
          %1762 = sbr.rel (%p1760) target = $region116
        $region115: #{tpu_custom_call.1} parent=111 // pred_region
          %s1763 = sand.u32 %s351, 1
          %s1764 = scalar_lea.sflag [#allocation6], %s1763
          %s1765 = sand.u32 %s351, 1
          %s1766 = smul.addr %s1765, 8
          %s1767 = scalar_lea.vmem [#allocation16], %s1766
          %1768 = dma.done %s1764, 128
        $region116: #{tpu_custom_call.1} parent=111 // pred_fallthru
          _
        // Predicated region
        $region117: #{tpu_custom_call.1} parent=111 // pred_check
          %p1769 = pneg %p396
        $region118: #{tpu_custom_call.1} parent=111 // pred_check_branch
          %1771 = sbr.rel (%p1769) target = $region120
        $region119: #{tpu_custom_call.1} parent=111 // pred_region
          %s1772 = sand.u32 %s381, 1
          %s1773 = scalar_lea.sflag [#allocation18], %s1772
          %s1774 = sand.u32 %s381, 1
          %s1775 = smul.addr %s1774, 32
          %s1776 = scalar_lea.vmem [#allocation17], %s1775
          %1777 = dma.done %s1773, 512
        $region120: #{tpu_custom_call.1} parent=111 // pred_fallthru
          _
      $region112: #{tpu_custom_call.1} parent=5 // pred_fallthru
        _
    $region6: #{tpu_custom_call.1} parent=1 // loop_footer
      %s37 = sadd.s32 1, %s33
    $region7: #{tpu_custom_call.1} parent=1 // loop_footer_branch
      %32 = sbr.rel target = $region3
    $region8: #{tpu_custom_call.1} parent=1 // loop_exit
      _
    %1778 = vsyncpa [#allocation5], 1
    %s1779 = scalar_lea.sflag [#allocation5], 1
    %1780 = vsyncpa %s1779, 1
    %1781 = vsyncpa [#allocation8], 1
    %s1782 = scalar_lea.sflag [#allocation8], 1
    %1783 = vsyncpa %s1782, 1
    %1784 = vsyncpa [#allocation11], 1
    %1785 = vsyncpa [#allocation14], 1
    %1786 = vsyncpa [#allocation6], 1
    %s1787 = scalar_lea.sflag [#allocation6], 1
    %1788 = vsyncpa %s1787, 1
    %1789 = vsyncpa [#allocation18], 1
    %s1790 = scalar_lea.sflag [#allocation18], 1
    %1791 = vsyncpa %s1790, 1

</llo_original>
